<compile_context>
chip_gen: v5e
topology: v5e:2x2
jax: 0.10.0
libtpu: 0.0.40
codegen_flags: <defaults>
</compile_context>

<pallas_src>
import functools

import jax
import jax.numpy as jnp
from jax import lax
from jax.experimental import pallas as pl
from jax.experimental.pallas import tpu as pltpu


_SQRT_HALF = 0.7071067811865476


def _erf_approx(z):
    """Abramowitz & Stegun 7.1.26 erf approximation (|err| < 1.5e-7).

    Built only from exp / mul / add / where so it lowers cleanly inside a
    Mosaic kernel (exact GELU needs erf).
    """
    sign = jnp.where(z >= 0.0, 1.0, -1.0)
    a = jnp.abs(z)
    t = 1.0 / (1.0 + 0.3275911 * a)
    poly = t * (0.254829592 + t * (-0.284496736 + t * (1.421413741
               + t * (-1.453152027 + t * 1.061405429))))
    return sign * (1.0 - poly * jnp.exp(-a * a))


def _gelu_exact(x):
    """PyTorch nn.GELU() default (erf form)."""
    return 0.5 * x * (1.0 + _erf_approx(x * _SQRT_HALF))


# -----------------------------------------------------------------------------
# Fused kernel: one grid step = one image
# -----------------------------------------------------------------------------

def _repvit_block_kernel(ph_ref, wdw_ref, bdw_ref, w1_ref, b1_ref,
                         w2_ref, b2_ref, w3_ref, b3_ref, o_ref,
                         *, H2, W2, Cin):
    # ---- depthwise 3x3 / stride-2 conv + folded BN: pure VPU multiply-adds --
    wdw = wdw_ref[...]                                   # (3, 3, 1, Cin), BN-scaled
    acc = jnp.zeros((H2, W2, Cin), jnp.float32)
    for kh in range(3):
        for kw in range(3):
            p = (kh % 2) * 2 + (kw % 2)                  # 2x2 spatial phase of tap
            rh, rw = kh // 2, kw // 2                    # shift inside the phase
            tap = ph_ref[0, p, rh:rh + H2, rw:rw + W2, :]    # (H2, W2, Cin)
            acc = acc + tap * wdw[kh, kw:kw + 1]         # * (1, 1, Cin)
    t0 = (acc + bdw_ref[...]).reshape(H2 * W2, Cin)      # (M, Cin)

    # ---- 1x1 convs (token-mixer tail + residual channel mixer) -------------
    t = jnp.dot(t0, w1_ref[...], preferred_element_type=jnp.float32) + b1_ref[...]
    h = jnp.dot(t, w2_ref[...], preferred_element_type=jnp.float32) + b2_ref[...]
    h = _gelu_exact(h)
    y = t + jnp.dot(h, w3_ref[...], preferred_element_type=jnp.float32) + b3_ref[...]

    # ---- channels-first store: lane axis carries the (larger) spatial dim --
    o_ref[0] = jnp.transpose(y, (1, 0))                  # (Cout, M)


# -----------------------------------------------------------------------------
# Wrapper
# -----------------------------------------------------------------------------

def repvit_block_forward(x_nchw, params):
    """RepViTBlock.forward (stride=2 path) on NCHW input; returns NCHW output."""
    N, Cin, H, W = x_nchw.shape
    assert H % 2 == 0 and W % 2 == 0
    H2, W2 = H // 2, W // 2
    M = H2 * W2
    Cout = params["w1_f"].shape[1]
    Chid = params["w2_f"].shape[1]

    # One-time input layout prep (pure data movement, runs once on the input):
    # NCHW -> NHWC, zero-pad by 1, 2x2 space-to-depth phases so the stride-2
    # depthwise conv becomes 9 static contiguous slices inside the kernel.
    x = jnp.transpose(x_nchw, (0, 2, 3, 1))
    xp = jnp.pad(x, ((0, 0), (1, 1), (1, 1), (0, 0)))
    phases = jnp.stack([xp[:, pr::2, pc::2, :]
                        for pr in (0, 1) for pc in (0, 1)], axis=1)
    # phases: (N, 4, H2 + 1, W2 + 1, Cin)

    kern = functools.partial(_repvit_block_kernel, H2=H2, W2=W2, Cin=Cin)
    out = pl.pallas_call(
        kern,
        out_shape=jax.ShapeDtypeStruct((N, Cout, M), jnp.float32),
        grid_spec=pltpu.PrefetchScalarGridSpec(
            num_scalar_prefetch=0,
            grid=(N,),
            in_specs=[
                pl.BlockSpec((1, 4, H2 + 1, W2 + 1, Cin),
                             lambda n: (n, 0, 0, 0, 0)),
                pl.BlockSpec((3, 3, 1, Cin), lambda n: (0, 0, 0, 0)),
                pl.BlockSpec((1, 1, Cin), lambda n: (0, 0, 0)),
                pl.BlockSpec((Cin, Cout), lambda n: (0, 0)),
                pl.BlockSpec((1, Cout), lambda n: (0, 0)),
                pl.BlockSpec((Cout, Chid), lambda n: (0, 0)),
                pl.BlockSpec((1, Chid), lambda n: (0, 0)),
                pl.BlockSpec((Chid, Cout), lambda n: (0, 0)),
                pl.BlockSpec((1, Cout), lambda n: (0, 0)),
            ],
            out_specs=pl.BlockSpec((1, Cout, M), lambda n: (n, 0, 0)),
        ),
        compiler_params=pltpu.CompilerParams(
            dimension_semantics=("parallel",)),
    )(phases,
      params["w_dw_f"], params["b_dw"],
      params["w1_f"], params["b1"],
      params["w2_f"], params["b2"],
      params["w3_f"], params["b3"])
    # (N, Cout, M) is already channels-first -> free reshape to NCHW.
    return out.reshape(N, Cout, H2, W2)


# -----------------------------------------------------------------------------
# Deterministic synthetic parameters (eval-mode BN folded for the kernel)
# -----------------------------------------------------------------------------

def _init_bn(key, c):
    kg, kb, km, kv = jax.random.split(key, 4)
    gamma = 1.0 + 0.1 * jax.random.normal(kg, (c,), jnp.float32)
    beta = 0.1 * jax.random.normal(kb, (c,), jnp.float32)
    mean = 0.1 * jax.random.normal(km, (c,), jnp.float32)
    var = jnp.abs(jax.random.normal(kv, (c,), jnp.float32)) + 0.5
    scale = gamma / jnp.sqrt(var + 1e-5)                 # nn.BatchNorm2d eps
    bias = beta - mean * scale
    return scale, bias


def init_repvit_block(key, inp, oup):
    """Random-but-deterministic params. BN uses random running stats/affine so
    the numerical check is meaningful (bn_weight_init values only affect
    initialization, not the forward semantics being implemented)."""
    k_dw, k_dwbn, k1, k1bn, k2, k2bn, k3, k3bn = jax.random.split(key, 8)
    w_dw = 0.1 * jax.random.normal(k_dw, (3, 3, inp), jnp.float32)   # depthwise 3x3
    w1 = 0.1 * jax.random.normal(k1, (inp, oup), jnp.float32)        # 1x1 inp->oup
    w2 = 0.1 * jax.random.normal(k2, (oup, 2 * oup), jnp.float32)    # 1x1 oup->2*oup
    w3 = 0.1 * jax.random.normal(k3, (2 * oup, oup), jnp.float32)    # 1x1 2*oup->oup
    s_dw, b_dw = _init_bn(k_dwbn, inp)
    s1, b1 = _init_bn(k1bn, oup)
    s2, b2 = _init_bn(k2bn, 2 * oup)
    s3, b3 = _init_bn(k3bn, oup)
    return {
        # raw params (used by the pure-JAX reference)
        "w_dw": w_dw, "s_dw": s_dw, "b_dw_v": b_dw,
        "w1": w1, "s1": s1, "b1_v": b1,
        "w2": w2, "s2": s2, "b2_v": b2,
        "w3": w3, "s3": s3, "b3_v": b3,
        # BN folded into the weights, shaped for the Pallas kernel
        "w_dw_f": (w_dw * s_dw).reshape(3, 3, 1, inp),
        "b_dw": b_dw.reshape(1, 1, inp),
        "w1_f": w1 * s1[None, :], "b1": b1.reshape(1, oup),
        "w2_f": w2 * s2[None, :], "b2": b2.reshape(1, 2 * oup),
        "w3_f": w3 * s3[None, :], "b3": b3.reshape(1, oup),
    }


# -----------------------------------------------------------------------------
# Pure-JAX reference (lax conv / matmul / exact erf GELU) for verification
# -----------------------------------------------------------------------------

def repvit_block_reference(x_nchw, params):
    x = jnp.transpose(x_nchw, (0, 2, 3, 1))
    Cin = x.shape[-1]
    w_hwio = params["w_dw"].reshape(3, 3, 1, Cin)        # depthwise (groups=Cin)
    y = lax.conv_general_dilated(
        x, w_hwio, window_strides=(2, 2), padding=((1, 1), (1, 1)),
        dimension_numbers=("NHWC", "HWIO", "NHWC"), feature_group_count=Cin)
    y = y * params["s_dw"] + params["b_dw_v"]
    t = (y @ params["w1"]) * params["s1"] + params["b1_v"]
    h = (t @ params["w2"]) * params["s2"] + params["b2_v"]
    h = 0.5 * h * (1.0 + lax.erf(h * _SQRT_HALF))        # exact GELU (nn.GELU default)
    out = t + (h @ params["w3"]) * params["s3"] + params["b3_v"]
    return jnp.transpose(out, (0, 3, 1, 2))


# -----------------------------------------------------------------------------
# Main
# -----------------------------------------------------------------------------

if __name__ == "__main__":
    key = jax.random.PRNGKey(0)
    k_x, k_p = jax.random.split(key)

    # RepViTBlock(in1, inp=8, hidden_dim=16, oup=16, kernel_size=3, stride=2)
    N, INP, OUP, H, W = 2, 8, 16, 16, 16
    x = jax.random.normal(k_x, (N, INP, H, W), jnp.float32)   # NCHW like PyTorch
    params = init_repvit_block(k_p, INP, OUP)

    out = jax.block_until_ready(repvit_block_forward(x, params))
    ref = jax.block_until_ready(repvit_block_reference(x, params))

    assert out.shape == (N, OUP, H // 2, W // 2)
    assert bool(jnp.all(jnp.isfinite(out)))
    assert jnp.allclose(out, ref, atol=2e-3, rtol=2e-3), \
        float(jnp.max(jnp.abs(out - ref)))
    print("KERNEL_OK")
</pallas_src>

<mosaic_0001>
module attributes {stable_mosaic.version = 11 : i64} {
  func.func @_repvit_block_kernel(%arg0: i32, %arg1: memref<1x4x9x9x8xf32, #tpu.memory_space<vmem>>, %arg2: memref<3x3x1x8xf32, #tpu.memory_space<vmem>>, %arg3: memref<1x1x8xf32, #tpu.memory_space<vmem>>, %arg4: memref<8x16xf32, #tpu.memory_space<vmem>>, %arg5: memref<1x16xf32, #tpu.memory_space<vmem>>, %arg6: memref<16x32xf32, #tpu.memory_space<vmem>>, %arg7: memref<1x32xf32, #tpu.memory_space<vmem>>, %arg8: memref<32x16xf32, #tpu.memory_space<vmem>>, %arg9: memref<1x16xf32, #tpu.memory_space<vmem>>, %arg10: memref<1x16x64xf32, #tpu.memory_space<vmem>>) attributes {dimension_semantics = [#tpu.dimension_semantics<parallel>], iteration_bounds = array<i64: 2>, scalar_prefetch = 0 : i64, scratch_operands = 0 : i64, tpu.core_type = #tpu.core_type<tc>, window_params = [{transform_indices = @transform_0, window_bounds = array<i64: 1, 4, 9, 9, 8>}, {pipeline_mode = #tpu.pipeline_mode<synchronous>, transform_indices = @transform_1, window_bounds = array<i64: 3, 3, 1, 8>}, {pipeline_mode = #tpu.pipeline_mode<synchronous>, transform_indices = @transform_2, window_bounds = array<i64: 1, 1, 8>}, {pipeline_mode = #tpu.pipeline_mode<synchronous>, transform_indices = @transform_3, window_bounds = array<i64: 8, 16>}, {pipeline_mode = #tpu.pipeline_mode<synchronous>, transform_indices = @transform_4, window_bounds = array<i64: 1, 16>}, {pipeline_mode = #tpu.pipeline_mode<synchronous>, transform_indices = @transform_5, window_bounds = array<i64: 16, 32>}, {pipeline_mode = #tpu.pipeline_mode<synchronous>, transform_indices = @transform_6, window_bounds = array<i64: 1, 32>}, {pipeline_mode = #tpu.pipeline_mode<synchronous>, transform_indices = @transform_7, window_bounds = array<i64: 32, 16>}, {pipeline_mode = #tpu.pipeline_mode<synchronous>, transform_indices = @transform_8, window_bounds = array<i64: 1, 16>}, {transform_indices = @transform_9, window_bounds = array<i64: 1, 16, 64>}]} {
    %c0 = arith.constant 0 : index
    %c0_0 = arith.constant 0 : index
    %c0_1 = arith.constant 0 : index
    %c0_2 = arith.constant 0 : index
    %0 = vector.load %arg2[%c0, %c0_0, %c0_1, %c0_2] : memref<3x3x1x8xf32, #tpu.memory_space<vmem>>, vector<3x3x1x8xf32>
    %cst = arith.constant 0.000000e+00 : f32
    %1 = vector.broadcast %cst : f32 to vector<8x8x8xf32>
    %c0_3 = arith.constant 0 : index
    %c0_4 = arith.constant 0 : index
    %c0_5 = arith.constant 0 : index
    %c0_6 = arith.constant 0 : index
    %c0_7 = arith.constant 0 : index
    %2 = vector.load %arg1[%c0_3, %c0_4, %c0_5, %c0_6, %c0_7] : memref<1x4x9x9x8xf32, #tpu.memory_space<vmem>>, vector<1x1x8x8x8xf32>
    %3 = vector.shape_cast %2 : vector<1x1x8x8x8xf32> to vector<8x8x8xf32>
    %4 = vector.extract_strided_slice %0 {offsets = [0, 0, 0, 0], sizes = [1, 1, 1, 8], strides = [1, 1, 1, 1]} : vector<3x3x1x8xf32> to vector<1x1x1x8xf32>
    %5 = vector.shape_cast %4 : vector<1x1x1x8xf32> to vector<1x1x8xf32>
    %6 = vector.broadcast %5 : vector<1x1x8xf32> to vector<8x8x8xf32>
    %7 = arith.mulf %3, %6 : vector<8x8x8xf32>
    %8 = arith.addf %1, %7 : vector<8x8x8xf32>
    %c0_8 = arith.constant 0 : index
    %c1 = arith.constant 1 : index
    %c0_9 = arith.constant 0 : index
    %c0_10 = arith.constant 0 : index
    %c0_11 = arith.constant 0 : index
    %9 = vector.load %arg1[%c0_8, %c1, %c0_9, %c0_10, %c0_11] : memref<1x4x9x9x8xf32, #tpu.memory_space<vmem>>, vector<1x1x8x8x8xf32>
    %10 = vector.shape_cast %9 : vector<1x1x8x8x8xf32> to vector<8x8x8xf32>
    %11 = vector.extract_strided_slice %0 {offsets = [0, 1, 0, 0], sizes = [1, 1, 1, 8], strides = [1, 1, 1, 1]} : vector<3x3x1x8xf32> to vector<1x1x1x8xf32>
    %12 = vector.shape_cast %11 : vector<1x1x1x8xf32> to vector<1x1x8xf32>
    %13 = vector.broadcast %12 : vector<1x1x8xf32> to vector<8x8x8xf32>
    %14 = arith.mulf %10, %13 : vector<8x8x8xf32>
    %15 = arith.addf %8, %14 : vector<8x8x8xf32>
    %c0_12 = arith.constant 0 : index
    %c0_13 = arith.constant 0 : index
    %c0_14 = arith.constant 0 : index
    %c1_15 = arith.constant 1 : index
    %c0_16 = arith.constant 0 : index
    %16 = vector.load %arg1[%c0_12, %c0_13, %c0_14, %c1_15, %c0_16] : memref<1x4x9x9x8xf32, #tpu.memory_space<vmem>>, vector<1x1x8x8x8xf32>
    %17 = vector.shape_cast %16 : vector<1x1x8x8x8xf32> to vector<8x8x8xf32>
    %18 = vector.extract_strided_slice %0 {offsets = [0, 2, 0, 0], sizes = [1, 1, 1, 8], strides = [1, 1, 1, 1]} : vector<3x3x1x8xf32> to vector<1x1x1x8xf32>
    %19 = vector.shape_cast %18 : vector<1x1x1x8xf32> to vector<1x1x8xf32>
    %20 = vector.broadcast %19 : vector<1x1x8xf32> to vector<8x8x8xf32>
    %21 = arith.mulf %17, %20 : vector<8x8x8xf32>
    %22 = arith.addf %15, %21 : vector<8x8x8xf32>
    %c0_17 = arith.constant 0 : index
    %c2 = arith.constant 2 : index
    %c0_18 = arith.constant 0 : index
    %c0_19 = arith.constant 0 : index
    %c0_20 = arith.constant 0 : index
    %23 = vector.load %arg1[%c0_17, %c2, %c0_18, %c0_19, %c0_20] : memref<1x4x9x9x8xf32, #tpu.memory_space<vmem>>, vector<1x1x8x8x8xf32>
    %24 = vector.shape_cast %23 : vector<1x1x8x8x8xf32> to vector<8x8x8xf32>
    %25 = vector.extract_strided_slice %0 {offsets = [1, 0, 0, 0], sizes = [1, 1, 1, 8], strides = [1, 1, 1, 1]} : vector<3x3x1x8xf32> to vector<1x1x1x8xf32>
    %26 = vector.shape_cast %25 : vector<1x1x1x8xf32> to vector<1x1x8xf32>
    %27 = vector.broadcast %26 : vector<1x1x8xf32> to vector<8x8x8xf32>
    %28 = arith.mulf %24, %27 : vector<8x8x8xf32>
    %29 = arith.addf %22, %28 : vector<8x8x8xf32>
    %c0_21 = arith.constant 0 : index
    %c3 = arith.constant 3 : index
    %c0_22 = arith.constant 0 : index
    %c0_23 = arith.constant 0 : index
    %c0_24 = arith.constant 0 : index
    %30 = vector.load %arg1[%c0_21, %c3, %c0_22, %c0_23, %c0_24] : memref<1x4x9x9x8xf32, #tpu.memory_space<vmem>>, vector<1x1x8x8x8xf32>
    %31 = vector.shape_cast %30 : vector<1x1x8x8x8xf32> to vector<8x8x8xf32>
    %32 = vector.extract_strided_slice %0 {offsets = [1, 1, 0, 0], sizes = [1, 1, 1, 8], strides = [1, 1, 1, 1]} : vector<3x3x1x8xf32> to vector<1x1x1x8xf32>
    %33 = vector.shape_cast %32 : vector<1x1x1x8xf32> to vector<1x1x8xf32>
    %34 = vector.broadcast %33 : vector<1x1x8xf32> to vector<8x8x8xf32>
    %35 = arith.mulf %31, %34 : vector<8x8x8xf32>
    %36 = arith.addf %29, %35 : vector<8x8x8xf32>
    %c0_25 = arith.constant 0 : index
    %c2_26 = arith.constant 2 : index
    %c0_27 = arith.constant 0 : index
    %c1_28 = arith.constant 1 : index
    %c0_29 = arith.constant 0 : index
    %37 = vector.load %arg1[%c0_25, %c2_26, %c0_27, %c1_28, %c0_29] : memref<1x4x9x9x8xf32, #tpu.memory_space<vmem>>, vector<1x1x8x8x8xf32>
    %38 = vector.shape_cast %37 : vector<1x1x8x8x8xf32> to vector<8x8x8xf32>
    %39 = vector.extract_strided_slice %0 {offsets = [1, 2, 0, 0], sizes = [1, 1, 1, 8], strides = [1, 1, 1, 1]} : vector<3x3x1x8xf32> to vector<1x1x1x8xf32>
    %40 = vector.shape_cast %39 : vector<1x1x1x8xf32> to vector<1x1x8xf32>
    %41 = vector.broadcast %40 : vector<1x1x8xf32> to vector<8x8x8xf32>
    %42 = arith.mulf %38, %41 : vector<8x8x8xf32>
    %43 = arith.addf %36, %42 : vector<8x8x8xf32>
    %c0_30 = arith.constant 0 : index
    %c0_31 = arith.constant 0 : index
    %c1_32 = arith.constant 1 : index
    %c0_33 = arith.constant 0 : index
    %c0_34 = arith.constant 0 : index
    %44 = vector.load %arg1[%c0_30, %c0_31, %c1_32, %c0_33, %c0_34] : memref<1x4x9x9x8xf32, #tpu.memory_space<vmem>>, vector<1x1x8x8x8xf32>
    %45 = vector.shape_cast %44 : vector<1x1x8x8x8xf32> to vector<8x8x8xf32>
    %46 = vector.extract_strided_slice %0 {offsets = [2, 0, 0, 0], sizes = [1, 1, 1, 8], strides = [1, 1, 1, 1]} : vector<3x3x1x8xf32> to vector<1x1x1x8xf32>
    %47 = vector.shape_cast %46 : vector<1x1x1x8xf32> to vector<1x1x8xf32>
    %48 = vector.broadcast %47 : vector<1x1x8xf32> to vector<8x8x8xf32>
    %49 = arith.mulf %45, %48 : vector<8x8x8xf32>
    %50 = arith.addf %43, %49 : vector<8x8x8xf32>
    %c0_35 = arith.constant 0 : index
    %c1_36 = arith.constant 1 : index
    %c1_37 = arith.constant 1 : index
    %c0_38 = arith.constant 0 : index
    %c0_39 = arith.constant 0 : index
    %51 = vector.load %arg1[%c0_35, %c1_36, %c1_37, %c0_38, %c0_39] : memref<1x4x9x9x8xf32, #tpu.memory_space<vmem>>, vector<1x1x8x8x8xf32>
    %52 = vector.shape_cast %51 : vector<1x1x8x8x8xf32> to vector<8x8x8xf32>
    %53 = vector.extract_strided_slice %0 {offsets = [2, 1, 0, 0], sizes = [1, 1, 1, 8], strides = [1, 1, 1, 1]} : vector<3x3x1x8xf32> to vector<1x1x1x8xf32>
    %54 = vector.shape_cast %53 : vector<1x1x1x8xf32> to vector<1x1x8xf32>
    %55 = vector.broadcast %54 : vector<1x1x8xf32> to vector<8x8x8xf32>
    %56 = arith.mulf %52, %55 : vector<8x8x8xf32>
    %57 = arith.addf %50, %56 : vector<8x8x8xf32>
    %c0_40 = arith.constant 0 : index
    %c0_41 = arith.constant 0 : index
    %c1_42 = arith.constant 1 : index
    %c1_43 = arith.constant 1 : index
    %c0_44 = arith.constant 0 : index
    %58 = vector.load %arg1[%c0_40, %c0_41, %c1_42, %c1_43, %c0_44] : memref<1x4x9x9x8xf32, #tpu.memory_space<vmem>>, vector<1x1x8x8x8xf32>
    %59 = vector.shape_cast %58 : vector<1x1x8x8x8xf32> to vector<8x8x8xf32>
    %60 = vector.extract_strided_slice %0 {offsets = [2, 2, 0, 0], sizes = [1, 1, 1, 8], strides = [1, 1, 1, 1]} : vector<3x3x1x8xf32> to vector<1x1x1x8xf32>
    %61 = vector.shape_cast %60 : vector<1x1x1x8xf32> to vector<1x1x8xf32>
    %62 = vector.broadcast %61 : vector<1x1x8xf32> to vector<8x8x8xf32>
    %63 = arith.mulf %59, %62 : vector<8x8x8xf32>
    %64 = arith.addf %57, %63 : vector<8x8x8xf32>
    %c0_45 = arith.constant 0 : index
    %c0_46 = arith.constant 0 : index
    %c0_47 = arith.constant 0 : index
    %65 = vector.load %arg3[%c0_45, %c0_46, %c0_47] : memref<1x1x8xf32, #tpu.memory_space<vmem>>, vector<1x1x8xf32>
    %66 = vector.broadcast %65 : vector<1x1x8xf32> to vector<8x8x8xf32>
    %67 = arith.addf %64, %66 : vector<8x8x8xf32>
    %68 = vector.shape_cast %67 : vector<8x8x8xf32> to vector<64x8xf32>
    %c0_48 = arith.constant 0 : index
    %c0_49 = arith.constant 0 : index
    %69 = vector.load %arg4[%c0_48, %c0_49] : memref<8x16xf32, #tpu.memory_space<vmem>>, vector<8x16xf32>
    %cst_50 = arith.constant dense<0.000000e+00> : vector<64x16xf32>
    %70 = tpu.matmul %68, %69, %cst_50 {dimension_numbers = #tpu.dot_dimension_numbers<[1], [0], [0], [1], [0, 0, 1, 1], [], []>} : vector<64x8xf32>, vector<8x16xf32>, vector<64x16xf32> -> vector<64x16xf32>
    %c0_51 = arith.constant 0 : index
    %c0_52 = arith.constant 0 : index
    %71 = vector.load %arg5[%c0_51, %c0_52] : memref<1x16xf32, #tpu.memory_space<vmem>>, vector<1x16xf32>
    %72 = vector.broadcast %71 : vector<1x16xf32> to vector<64x16xf32>
    %73 = arith.addf %70, %72 : vector<64x16xf32>
    %c0_53 = arith.constant 0 : index
    %c0_54 = arith.constant 0 : index
    %74 = vector.load %arg6[%c0_53, %c0_54] : memref<16x32xf32, #tpu.memory_space<vmem>>, vector<16x32xf32>
    %cst_55 = arith.constant dense<0.000000e+00> : vector<64x32xf32>
    %75 = tpu.matmul %73, %74, %cst_55 {dimension_numbers = #tpu.dot_dimension_numbers<[1], [0], [0], [1], [0, 0, 1, 1], [], []>} : vector<64x16xf32>, vector<16x32xf32>, vector<64x32xf32> -> vector<64x32xf32>
    %c0_56 = arith.constant 0 : index
    %c0_57 = arith.constant 0 : index
    %76 = vector.load %arg7[%c0_56, %c0_57] : memref<1x32xf32, #tpu.memory_space<vmem>>, vector<1x32xf32>
    %77 = vector.broadcast %76 : vector<1x32xf32> to vector<64x32xf32>
    %78 = arith.addf %75, %77 : vector<64x32xf32>
    %cst_58 = arith.constant 5.000000e-01 : f32
    %79 = vector.broadcast %cst_58 : f32 to vector<64x32xf32>
    %80 = arith.mulf %79, %78 : vector<64x32xf32>
    %cst_59 = arith.constant 0.707106769 : f32
    %81 = vector.broadcast %cst_59 : f32 to vector<64x32xf32>
    %82 = arith.mulf %78, %81 : vector<64x32xf32>
    %cst_60 = arith.constant 0.000000e+00 : f32
    %83 = vector.broadcast %cst_60 : f32 to vector<64x32xf32>
    %84 = arith.cmpf oge, %82, %83 : vector<64x32xf32>
    %cst_61 = arith.constant 1.000000e+00 : f32
    %cst_62 = arith.constant -1.000000e+00 : f32
    %85 = vector.broadcast %cst_61 : f32 to vector<64x32xf32>
    %86 = vector.broadcast %cst_62 : f32 to vector<64x32xf32>
    %87 = arith.select %84, %85, %86 : vector<64x32xi1>, vector<64x32xf32>
    %88 = math.absf %82 : vector<64x32xf32>
    %cst_63 = arith.constant 0.327591091 : f32
    %89 = vector.broadcast %cst_63 : f32 to vector<64x32xf32>
    %90 = arith.mulf %89, %88 : vector<64x32xf32>
    %cst_64 = arith.constant 1.000000e+00 : f32
    %91 = vector.broadcast %cst_64 : f32 to vector<64x32xf32>
    %92 = arith.addf %91, %90 : vector<64x32xf32>
    %cst_65 = arith.constant 1.000000e+00 : f32
    %93 = vector.broadcast %cst_65 : f32 to vector<64x32xf32>
    %94 = arith.divf %93, %92 : vector<64x32xf32>
    %cst_66 = arith.constant 1.06140542 : f32
    %95 = vector.broadcast %cst_66 : f32 to vector<64x32xf32>
    %96 = arith.mulf %94, %95 : vector<64x32xf32>
    %cst_67 = arith.constant -1.45315206 : f32
    %97 = vector.broadcast %cst_67 : f32 to vector<64x32xf32>
    %98 = arith.addf %97, %96 : vector<64x32xf32>
    %99 = arith.mulf %94, %98 : vector<64x32xf32>
    %cst_68 = arith.constant 1.42141378 : f32
    %100 = vector.broadcast %cst_68 : f32 to vector<64x32xf32>
    %101 = arith.addf %100, %99 : vector<64x32xf32>
    %102 = arith.mulf %94, %101 : vector<64x32xf32>
    %cst_69 = arith.constant -0.284496725 : f32
    %103 = vector.broadcast %cst_69 : f32 to vector<64x32xf32>
    %104 = arith.addf %103, %102 : vector<64x32xf32>
    %105 = arith.mulf %94, %104 : vector<64x32xf32>
    %cst_70 = arith.constant 0.254829586 : f32
    %106 = vector.broadcast %cst_70 : f32 to vector<64x32xf32>
    %107 = arith.addf %106, %105 : vector<64x32xf32>
    %108 = arith.mulf %94, %107 : vector<64x32xf32>
    %cst_71 = arith.constant 0.000000e+00 : f32
    %109 = vector.broadcast %cst_71 : f32 to vector<64x32xf32>
    %110 = arith.subf %109, %88 : vector<64x32xf32>
    %111 = arith.mulf %110, %88 : vector<64x32xf32>
    %112 = math.exp %111 : vector<64x32xf32>
    %113 = arith.mulf %108, %112 : vector<64x32xf32>
    %cst_72 = arith.constant 1.000000e+00 : f32
    %114 = vector.broadcast %cst_72 : f32 to vector<64x32xf32>
    %115 = arith.subf %114, %113 : vector<64x32xf32>
    %116 = arith.mulf %87, %115 : vector<64x32xf32>
    %cst_73 = arith.constant 1.000000e+00 : f32
    %117 = vector.broadcast %cst_73 : f32 to vector<64x32xf32>
    %118 = arith.addf %117, %116 : vector<64x32xf32>
    %119 = arith.mulf %80, %118 : vector<64x32xf32>
    %c0_74 = arith.constant 0 : index
    %c0_75 = arith.constant 0 : index
    %120 = vector.load %arg8[%c0_74, %c0_75] : memref<32x16xf32, #tpu.memory_space<vmem>>, vector<32x16xf32>
    %cst_76 = arith.constant dense<0.000000e+00> : vector<64x16xf32>
    %121 = tpu.matmul %119, %120, %cst_76 {dimension_numbers = #tpu.dot_dimension_numbers<[1], [0], [0], [1], [0, 0, 1, 1], [], []>} : vector<64x32xf32>, vector<32x16xf32>, vector<64x16xf32> -> vector<64x16xf32>
    %122 = arith.addf %73, %121 : vector<64x16xf32>
    %c0_77 = arith.constant 0 : index
    %c0_78 = arith.constant 0 : index
    %123 = vector.load %arg9[%c0_77, %c0_78] : memref<1x16xf32, #tpu.memory_space<vmem>>, vector<1x16xf32>
    %124 = vector.broadcast %123 : vector<1x16xf32> to vector<64x16xf32>
    %125 = arith.addf %122, %124 : vector<64x16xf32>
    %126 = tpu.transpose %125, [1, 0] : vector<64x16xf32> -> vector<16x64xf32>
    %c0_79 = arith.constant 0 : index
    %c0_80 = arith.constant 0 : index
    %c0_81 = arith.constant 0 : index
    %127 = vector.load %arg10[%c0_79, %c0_80, %c0_81] : memref<1x16x64xf32, #tpu.memory_space<vmem>>, vector<1x16x64xf32>
    %128 = vector.shape_cast %127 : vector<1x16x64xf32> to vector<16x64xf32>
    %129 = vector.shape_cast %126 : vector<16x64xf32> to vector<1x16x64xf32>
    tpu.vector_store %arg10[%c0_79, %c0_80, %c0_81], %129 {strides = array<i32>} : memref<1x16x64xf32, #tpu.memory_space<vmem>>, vector<1x16x64xf32>,
    return
  }
  func.func @transform_0(%arg0: i32) -> (i32, i32, i32, i32, i32) {
    %c0_i32 = arith.constant 0 : i32
    %c0_i32_0 = arith.constant 0 : i32
    %c0_i32_1 = arith.constant 0 : i32
    %c0_i32_2 = arith.constant 0 : i32
    %c0_i32_3 = arith.constant 0 : i32
    return %arg0, %c0_i32, %c0_i32_0, %c0_i32_1, %c0_i32_2 : i32, i32, i32, i32, i32
  }
  func.func @transform_1(%arg0: i32) -> (i32, i32, i32, i32) {
    %c0_i32 = arith.constant 0 : i32
    %c0_i32_0 = arith.constant 0 : i32
    %c0_i32_1 = arith.constant 0 : i32
    %c0_i32_2 = arith.constant 0 : i32
    %c0_i32_3 = arith.constant 0 : i32
    return %c0_i32, %c0_i32_0, %c0_i32_1, %c0_i32_2 : i32, i32, i32, i32
  }
  func.func @transform_2(%arg0: i32) -> (i32, i32, i32) {
    %c0_i32 = arith.constant 0 : i32
    %c0_i32_0 = arith.constant 0 : i32
    %c0_i32_1 = arith.constant 0 : i32
    %c0_i32_2 = arith.constant 0 : i32
    return %c0_i32, %c0_i32_0, %c0_i32_1 : i32, i32, i32
  }
  func.func @transform_3(%arg0: i32) -> (i32, i32) {
    %c0_i32 = arith.constant 0 : i32
    %c0_i32_0 = arith.constant 0 : i32
    %c0_i32_1 = arith.constant 0 : i32
    return %c0_i32, %c0_i32_0 : i32, i32
  }
  func.func @transform_4(%arg0: i32) -> (i32, i32) {
    %c0_i32 = arith.constant 0 : i32
    %c0_i32_0 = arith.constant 0 : i32
    %c0_i32_1 = arith.constant 0 : i32
    return %c0_i32, %c0_i32_0 : i32, i32
  }
  func.func @transform_5(%arg0: i32) -> (i32, i32) {
    %c0_i32 = arith.constant 0 : i32
    %c0_i32_0 = arith.constant 0 : i32
    %c0_i32_1 = arith.constant 0 : i32
    return %c0_i32, %c0_i32_0 : i32, i32
  }
  func.func @transform_6(%arg0: i32) -> (i32, i32) {
    %c0_i32 = arith.constant 0 : i32
    %c0_i32_0 = arith.constant 0 : i32
    %c0_i32_1 = arith.constant 0 : i32
    return %c0_i32, %c0_i32_0 : i32, i32
  }
  func.func @transform_7(%arg0: i32) -> (i32, i32) {
    %c0_i32 = arith.constant 0 : i32
    %c0_i32_0 = arith.constant 0 : i32
    %c0_i32_1 = arith.constant 0 : i32
    return %c0_i32, %c0_i32_0 : i32, i32
  }
  func.func @transform_8(%arg0: i32) -> (i32, i32) {
    %c0_i32 = arith.constant 0 : i32
    %c0_i32_0 = arith.constant 0 : i32
    %c0_i32_1 = arith.constant 0 : i32
    return %c0_i32, %c0_i32_0 : i32, i32
  }
  func.func @transform_9(%arg0: i32) -> (i32, i32, i32) {
    %c0_i32 = arith.constant 0 : i32
    %c0_i32_0 = arith.constant 0 : i32
    %c0_i32_1 = arith.constant 0 : i32
    return %arg0, %c0_i32, %c0_i32_0 : i32, i32, i32
  }
}

</mosaic_0001>

<llo_original>
// kernel: tpu_custom_call.1
$region0: #{tpu_custom_call.1}
  #allocation0 [shape = 'u32[]', space=smem, size = 0x4, offset = 0x4, fixed_abs, tag = 'smem constant byte address 0x4 - core index']
  #allocation1 [shape = 'u32[72,128]{1,0:T(1,128)}', space=vmem, size = 0x9000, scoped, tag = 'internal scratch']
  %s0 = inlined_call_operand.vmem [shape: f32[2,4,9,9,8], index: 0, kind: input, shape index: {}]
  %s1 = inlined_call_operand.vmem [shape: f32[3,3,1,8], index: 1, kind: input, shape index: {}]
  %s2 = inlined_call_operand.vmem [shape: f32[1,1,8], index: 2, kind: input, shape index: {}]
  %s3 = inlined_call_operand.vmem [shape: f32[8,16], index: 3, kind: input, shape index: {}]
  %s4 = inlined_call_operand.vmem [shape: f32[1,16], index: 4, kind: input, shape index: {}]
  %s5 = inlined_call_operand.vmem [shape: f32[16,32], index: 5, kind: input, shape index: {}]
  %s6 = inlined_call_operand.vmem [shape: f32[1,32], index: 6, kind: input, shape index: {}]
  %s7 = inlined_call_operand.vmem [shape: f32[32,16], index: 7, kind: input, shape index: {}]
  %s8 = inlined_call_operand.vmem [shape: f32[1,16], index: 8, kind: input, shape index: {}]
  %s9 = inlined_call_operand.hbm [shape: f32[2,16,64], index: 9, kind: output, shape index: {}]
  %s10 = sld [smem:[#allocation0]]
  $region69: #{tpu_custom_call.1} parent=0
    _
  %s12 = ssub.s32 1, %s10
  %s13 = scalar_select 0, %s12, %s10
  $region1: #{tpu_custom_call.1} parent=0
    #allocation2 [shape = 'u8[16384]{0}', space=vmem, size = 0x4000, scoped, tag = 'output window, operand 0']
    #allocation3 [shape = 's32[2]{0}', space=sflag, size = 0x8, scoped, tag = 'scoped memory for tpu_custom_call.1']
    %14 = vsyncpa [#allocation3], 0
    %s15 = scalar_lea.sflag [#allocation3], 1
    %16 = vsyncpa %s15, 0
    loop: start=0, step=1, limit=4
    $region2: #{tpu_custom_call.1} parent=1 // loop_pre_header
      _
    $region3: #{tpu_custom_call.1} parent=1 // loop_header
      %s18 = sphi 0, %s22
      %p19 = scmp.ge.s32.totalorder %s18, 4
      %s28 = sphi 0, %s30
      %s31 = sphi 0, %s28
      %s32 = sphi 0, %s31
      %s48 = sphi 0, %s32
      %s52 = sphi 0, %s52
      %s54 = sphi 0, %s52
      %s55 = sphi 0, %s54
      %s69 = sphi 0, %s55
      %s73 = sphi 0, %s73
      %s75 = sphi 0, %s73
      %s76 = sphi 0, %s75
      %s90 = sphi 0, %s76
      %s94 = sphi 0, %s94
      %s96 = sphi 0, %s94
      %s97 = sphi 0, %s96
      %s111 = sphi 0, %s97
      %s115 = sphi 0, %s115
      %s117 = sphi 0, %s115
      %s118 = sphi 0, %s117
      %s132 = sphi 0, %s118
      %s136 = sphi 0, %s136
      %s138 = sphi 0, %s136
      %s139 = sphi 0, %s138
      %s153 = sphi 0, %s139
      %s157 = sphi 0, %s157
      %s159 = sphi 0, %s157
      %s160 = sphi 0, %s159
      %s174 = sphi 0, %s160
      %s178 = sphi 0, %s178
      %s180 = sphi 0, %s178
      %s181 = sphi 0, %s180
      %s195 = sphi 0, %s181
      %s199 = sphi 0, %s199
      %s201 = sphi 0, %s199
      %s202 = sphi 0, %s201
      %s216 = sphi 0, %s202
      %s222 = sphi 0, %s224
      %s225 = sphi 0, %s222
      %s226 = sphi 0, %s225
      %s242 = sphi 0, %s226
    $region4: #{tpu_custom_call.1} parent=1 // loop_header_branch
      %21 = sbr.rel (%p19) target = $region8
    $region5: #{tpu_custom_call.1} parent=1 // loop_body
      %s23 = ssub.s32 %s18, 1
      %s24 = ssub.s32 %s18, 2
      %s25 = sadd.s32 %s18, 1
      %s26 = ssub.s32 %s18, %s25
      %p27 = scmp.eq.s32.totalorder %s26, 0
      %s29 = sadd.s32 %s28, 1
      %s30 = scalar_select %p27, %s28, %s29
      %p33 = pneg %p27
      %p34 = scmp.eq.s32.totalorder %s18, 1
      %p35 = por %p33, %p34
      %p36 = scmp.ne.s32.totalorder %s28, %s31
      %p37 = scmp.eq.s32.totalorder %s18, 0
      %p38 = por %p36, %p37
      %p39 = scmp.ne.s32.totalorder %s28, %s31
      %p40 = scmp.eq.s32.totalorder %s23, 1
      %p41 = por %p39, %p40
      %p42 = scmp.ne.s32.totalorder %s31, %s32
      %p43 = scmp.eq.s32.totalorder %s23, 0
      %p44 = por %p42, %p43
      %p45 = scmp.ne.s32.totalorder %s31, %s32
      %p46 = scmp.eq.s32.totalorder %s24, 1
      %p47 = por %p45, %p46
      %p49 = scmp.ne.s32.totalorder %s32, %s48
      %p50 = scmp.eq.s32.totalorder %s24, 0
      %p51 = por %p49, %p50
      %s53 = sadd.s32 %s52, 1
      %p56 = scmp.eq.s32.totalorder %s18, 1
      %p57 = scmp.ne.s32.totalorder %s52, %s54
      %p58 = scmp.eq.s32.totalorder %s18, 0
      %p59 = por %p57, %p58
      %p60 = scmp.ne.s32.totalorder %s52, %s54
      %p61 = scmp.eq.s32.totalorder %s23, 1
      %p62 = por %p60, %p61
      %p63 = scmp.ne.s32.totalorder %s54, %s55
      %p64 = scmp.eq.s32.totalorder %s23, 0
      %p65 = por %p63, %p64
      %p66 = scmp.ne.s32.totalorder %s54, %s55
      %p67 = scmp.eq.s32.totalorder %s24, 1
      %p68 = por %p66, %p67
      %p70 = scmp.ne.s32.totalorder %s55, %s69
      %p71 = scmp.eq.s32.totalorder %s24, 0
      %p72 = por %p70, %p71
      %s74 = sadd.s32 %s73, 1
      %p77 = scmp.eq.s32.totalorder %s18, 1
      %p78 = scmp.ne.s32.totalorder %s73, %s75
      %p79 = scmp.eq.s32.totalorder %s18, 0
      %p80 = por %p78, %p79
      %p81 = scmp.ne.s32.totalorder %s73, %s75
      %p82 = scmp.eq.s32.totalorder %s23, 1
      %p83 = por %p81, %p82
      %p84 = scmp.ne.s32.totalorder %s75, %s76
      %p85 = scmp.eq.s32.totalorder %s23, 0
      %p86 = por %p84, %p85
      %p87 = scmp.ne.s32.totalorder %s75, %s76
      %p88 = scmp.eq.s32.totalorder %s24, 1
      %p89 = por %p87, %p88
      %p91 = scmp.ne.s32.totalorder %s76, %s90
      %p92 = scmp.eq.s32.totalorder %s24, 0
      %p93 = por %p91, %p92
      %s95 = sadd.s32 %s94, 1
      %p98 = scmp.eq.s32.totalorder %s18, 1
      %p99 = scmp.ne.s32.totalorder %s94, %s96
      %p100 = scmp.eq.s32.totalorder %s18, 0
      %p101 = por %p99, %p100
      %p102 = scmp.ne.s32.totalorder %s94, %s96
      %p103 = scmp.eq.s32.totalorder %s23, 1
      %p104 = por %p102, %p103
      %p105 = scmp.ne.s32.totalorder %s96, %s97
      %p106 = scmp.eq.s32.totalorder %s23, 0
      %p107 = por %p105, %p106
      %p108 = scmp.ne.s32.totalorder %s96, %s97
      %p109 = scmp.eq.s32.totalorder %s24, 1
      %p110 = por %p108, %p109
      %p112 = scmp.ne.s32.totalorder %s97, %s111
      %p113 = scmp.eq.s32.totalorder %s24, 0
      %p114 = por %p112, %p113
      %s116 = sadd.s32 %s115, 1
      %p119 = scmp.eq.s32.totalorder %s18, 1
      %p120 = scmp.ne.s32.totalorder %s115, %s117
      %p121 = scmp.eq.s32.totalorder %s18, 0
      %p122 = por %p120, %p121
      %p123 = scmp.ne.s32.totalorder %s115, %s117
      %p124 = scmp.eq.s32.totalorder %s23, 1
      %p125 = por %p123, %p124
      %p126 = scmp.ne.s32.totalorder %s117, %s118
      %p127 = scmp.eq.s32.totalorder %s23, 0
      %p128 = por %p126, %p127
      %p129 = scmp.ne.s32.totalorder %s117, %s118
      %p130 = scmp.eq.s32.totalorder %s24, 1
      %p131 = por %p129, %p130
      %p133 = scmp.ne.s32.totalorder %s118, %s132
      %p134 = scmp.eq.s32.totalorder %s24, 0
      %p135 = por %p133, %p134
      %s137 = sadd.s32 %s136, 1
      %p140 = scmp.eq.s32.totalorder %s18, 1
      %p141 = scmp.ne.s32.totalorder %s136, %s138
      %p142 = scmp.eq.s32.totalorder %s18, 0
      %p143 = por %p141, %p142
      %p144 = scmp.ne.s32.totalorder %s136, %s138
      %p145 = scmp.eq.s32.totalorder %s23, 1
      %p146 = por %p144, %p145
      %p147 = scmp.ne.s32.totalorder %s138, %s139
      %p148 = scmp.eq.s32.totalorder %s23, 0
      %p149 = por %p147, %p148
      %p150 = scmp.ne.s32.totalorder %s138, %s139
      %p151 = scmp.eq.s32.totalorder %s24, 1
      %p152 = por %p150, %p151
      %p154 = scmp.ne.s32.totalorder %s139, %s153
      %p155 = scmp.eq.s32.totalorder %s24, 0
      %p156 = por %p154, %p155
      %s158 = sadd.s32 %s157, 1
      %p161 = scmp.eq.s32.totalorder %s18, 1
      %p162 = scmp.ne.s32.totalorder %s157, %s159
      %p163 = scmp.eq.s32.totalorder %s18, 0
      %p164 = por %p162, %p163
      %p165 = scmp.ne.s32.totalorder %s157, %s159
      %p166 = scmp.eq.s32.totalorder %s23, 1
      %p167 = por %p165, %p166
      %p168 = scmp.ne.s32.totalorder %s159, %s160
      %p169 = scmp.eq.s32.totalorder %s23, 0
      %p170 = por %p168, %p169
      %p171 = scmp.ne.s32.totalorder %s159, %s160
      %p172 = scmp.eq.s32.totalorder %s24, 1
      %p173 = por %p171, %p172
      %p175 = scmp.ne.s32.totalorder %s160, %s174
      %p176 = scmp.eq.s32.totalorder %s24, 0
      %p177 = por %p175, %p176
      %s179 = sadd.s32 %s178, 1
      %p182 = scmp.eq.s32.totalorder %s18, 1
      %p183 = scmp.ne.s32.totalorder %s178, %s180
      %p184 = scmp.eq.s32.totalorder %s18, 0
      %p185 = por %p183, %p184
      %p186 = scmp.ne.s32.totalorder %s178, %s180
      %p187 = scmp.eq.s32.totalorder %s23, 1
      %p188 = por %p186, %p187
      %p189 = scmp.ne.s32.totalorder %s180, %s181
      %p190 = scmp.eq.s32.totalorder %s23, 0
      %p191 = por %p189, %p190
      %p192 = scmp.ne.s32.totalorder %s180, %s181
      %p193 = scmp.eq.s32.totalorder %s24, 1
      %p194 = por %p192, %p193
      %p196 = scmp.ne.s32.totalorder %s181, %s195
      %p197 = scmp.eq.s32.totalorder %s24, 0
      %p198 = por %p196, %p197
      %s200 = sadd.s32 %s199, 1
      %p203 = scmp.eq.s32.totalorder %s18, 1
      %p204 = scmp.ne.s32.totalorder %s199, %s201
      %p205 = scmp.eq.s32.totalorder %s18, 0
      %p206 = por %p204, %p205
      %p207 = scmp.ne.s32.totalorder %s199, %s201
      %p208 = scmp.eq.s32.totalorder %s23, 1
      %p209 = por %p207, %p208
      %p210 = scmp.ne.s32.totalorder %s201, %s202
      %p211 = scmp.eq.s32.totalorder %s23, 0
      %p212 = por %p210, %p211
      %p213 = scmp.ne.s32.totalorder %s201, %s202
      %p214 = scmp.eq.s32.totalorder %s24, 1
      %p215 = por %p213, %p214
      %p217 = scmp.ne.s32.totalorder %s202, %s216
      %p218 = scmp.eq.s32.totalorder %s24, 0
      %p219 = por %p217, %p218
      %s220 = ssub.s32 %s18, %s25
      %p221 = scmp.eq.s32.totalorder %s220, 0
      %s223 = sadd.s32 %s222, 1
      %s224 = scalar_select %p221, %s222, %s223
      %p227 = pneg %p221
      %p228 = scmp.eq.s32.totalorder %s18, 1
      %p229 = por %p227, %p228
      %p230 = scmp.ne.s32.totalorder %s222, %s225
      %p231 = scmp.eq.s32.totalorder %s18, 0
      %p232 = por %p230, %p231
      %p233 = scmp.ne.s32.totalorder %s222, %s225
      %p234 = scmp.eq.s32.totalorder %s23, 1
      %p235 = por %p233, %p234
      %p236 = scmp.ne.s32.totalorder %s225, %s226
      %p237 = scmp.eq.s32.totalorder %s23, 0
      %p238 = por %p236, %p237
      %p239 = scmp.ne.s32.totalorder %s225, %s226
      %p240 = scmp.eq.s32.totalorder %s24, 1
      %p241 = por %p239, %p240
      %p243 = scmp.ne.s32.totalorder %s226, %s242
      %p244 = scmp.eq.s32.totalorder %s24, 0
      %p245 = por %p243, %p244
      %p246 = scmp.le.s32.totalorder 1, %s18
      %p247 = scmp.lt.s32.totalorder %s18, 3
      %p248 = pnand %p246, %p247
      %p249 = pneg %p248
      // Predicated region
      $region9: #{tpu_custom_call.1} parent=5 // pred_check
        _
      $region10: #{tpu_custom_call.1} parent=5 // pred_check_branch
        %251 = sbr.rel (%p248) target = $region12
      $region11: #{tpu_custom_call.1} parent=5 // pred_region
        %s252 = ssub.s32 %s18, 1
        // Predicated region
        $region13: #{tpu_custom_call.1} parent=11 // pred_check
          %p253 = pneg %p65
        $region14: #{tpu_custom_call.1} parent=11 // pred_check_branch
          %255 = sbr.rel (%p253) target = $region16
        $region15: #{tpu_custom_call.1} parent=11 // pred_region
          _
        $region16: #{tpu_custom_call.1} parent=11 // pred_fallthru
          _
        // Predicated region
        $region17: #{tpu_custom_call.1} parent=11 // pred_check
          %p256 = pneg %p86
        $region18: #{tpu_custom_call.1} parent=11 // pred_check_branch
          %258 = sbr.rel (%p256) target = $region20
        $region19: #{tpu_custom_call.1} parent=11 // pred_region
          _
        $region20: #{tpu_custom_call.1} parent=11 // pred_fallthru
          _
        // Predicated region
        $region21: #{tpu_custom_call.1} parent=11 // pred_check
          %p259 = pneg %p107
        $region22: #{tpu_custom_call.1} parent=11 // pred_check_branch
          %261 = sbr.rel (%p259) target = $region24
        $region23: #{tpu_custom_call.1} parent=11 // pred_region
          _
        $region24: #{tpu_custom_call.1} parent=11 // pred_fallthru
          _
        // Predicated region
        $region25: #{tpu_custom_call.1} parent=11 // pred_check
          %p262 = pneg %p128
        $region26: #{tpu_custom_call.1} parent=11 // pred_check_branch
          %264 = sbr.rel (%p262) target = $region28
        $region27: #{tpu_custom_call.1} parent=11 // pred_region
          _
        $region28: #{tpu_custom_call.1} parent=11 // pred_fallthru
          _
        // Predicated region
        $region29: #{tpu_custom_call.1} parent=11 // pred_check
          %p265 = pneg %p149
        $region30: #{tpu_custom_call.1} parent=11 // pred_check_branch
          %267 = sbr.rel (%p265) target = $region32
        $region31: #{tpu_custom_call.1} parent=11 // pred_region
          _
        $region32: #{tpu_custom_call.1} parent=11 // pred_fallthru
          _
        // Predicated region
        $region33: #{tpu_custom_call.1} parent=11 // pred_check
          %p268 = pneg %p170
        $region34: #{tpu_custom_call.1} parent=11 // pred_check_branch
          %270 = sbr.rel (%p268) target = $region36
        $region35: #{tpu_custom_call.1} parent=11 // pred_region
          _
        $region36: #{tpu_custom_call.1} parent=11 // pred_fallthru
          _
        // Predicated region
        $region37: #{tpu_custom_call.1} parent=11 // pred_check
          %p271 = pneg %p191
        $region38: #{tpu_custom_call.1} parent=11 // pred_check_branch
          %273 = sbr.rel (%p271) target = $region40
        $region39: #{tpu_custom_call.1} parent=11 // pred_region
          _
        $region40: #{tpu_custom_call.1} parent=11 // pred_fallthru
          _
        // Predicated region
        $region41: #{tpu_custom_call.1} parent=11 // pred_check
          %p274 = pneg %p212
        $region42: #{tpu_custom_call.1} parent=11 // pred_check_branch
          %276 = sbr.rel (%p274) target = $region44
        $region43: #{tpu_custom_call.1} parent=11 // pred_region
          _
        $region44: #{tpu_custom_call.1} parent=11 // pred_fallthru
          _
      $region12: #{tpu_custom_call.1} parent=5 // pred_fallthru
        _
      %p277 = scmp.lt.s32.totalorder %s18, 2
      // Predicated region
      $region45: #{tpu_custom_call.1} parent=5 // pred_check
        %p278 = pneg %p277
      $region46: #{tpu_custom_call.1} parent=5 // pred_check_branch
        %280 = sbr.rel (%p278) target = $region48
      $region47: #{tpu_custom_call.1} parent=5 // pred_region
        // Predicated region
        $region49: #{tpu_custom_call.1} parent=47 // pred_check
          %p281 = pneg %p38
        $region50: #{tpu_custom_call.1} parent=47 // pred_check_branch
          %283 = sbr.rel (%p281) target = $region52
        $region51: #{tpu_custom_call.1} parent=47 // pred_region
          %p284 = scmp.lt.s32.totalorder %s18, 1
          %s285 = scalar_select %p284, %s18, 1
          %s286 = smul.addr %s285, 72
          %s287 = smul.addr %s286, 8
          %s288 = scalar_lea.vmem %s0, %s287
        $region52: #{tpu_custom_call.1} parent=47 // pred_fallthru
          _
      $region48: #{tpu_custom_call.1} parent=5 // pred_fallthru
        _
      %p289 = scmp.le.s32.totalorder 1, %s18
      %p290 = scmp.lt.s32.totalorder %s18, 3
      %p291 = pnand %p289, %p290
      %p292 = pneg %p291
      // Predicated region
      $region53: #{tpu_custom_call.1} parent=5 // pred_check
        _
      $region54: #{tpu_custom_call.1} parent=5 // pred_check_branch
        %294 = sbr.rel (%p291) target = $region56
      $region55: #{tpu_custom_call.1} parent=5 // pred_region
        %s295 = ssub.s32 %s18, 1
        %p296 = scmp.lt.s32.totalorder %s23, 1
        %s297 = scalar_select %p296, %s23, 1
        %s298 = smul.addr %s297, 72
        %s299 = smul.addr %s298, 8
        %s300 = scalar_lea.vmem %s0, %s299
        %p301 = pneg %p44
        %p302 = pneg %p41
        %p303 = pneg %p65
        %p304 = pneg %p62
        %p305 = pneg %p86
        %p306 = pneg %p83
        %p307 = pneg %p107
        %p308 = pneg %p104
        %p309 = pneg %p128
        %p310 = pneg %p125
        %p311 = pneg %p149
        %p312 = pneg %p146
        %p313 = pneg %p170
        %p314 = pneg %p167
        %p315 = pneg %p191
        %p316 = pneg %p188
        %p317 = pneg %p212
        %p318 = pneg %p209
        %p319 = pneg %p238
        %p320 = pneg %p235
        %s321 = sand.u32 %s225, 1
        %s322 = scalar_lea.sflag [#allocation3], %s321
        %s323 = sand.u32 %s225, 1
        %s324 = smul.addr %s323, 16
        %s325 = scalar_lea.vmem [#allocation2], %s324
        %p326 = scmp.lt.s32.totalorder %s23, 1
        %s327 = scalar_select %p326, %s23, 1
        %s328 = smul.addr %s327, 72
        %s329 = smul.addr %s328, 8
        %s330 = scalar_lea.vmem %s0, %s329
        %v331 = vld [vmem:[%s1] sm:$0x1]
        %v332 = vld [vmem:[%s1 + $0x1] sm:$0x1]
        %v333 = vld [vmem:[%s1 + $0x2] sm:$0x1]
        %v334 = vld [vmem:[%s1 + $0x3] sm:$0x1]
        %v335 = vld [vmem:[%s1 + $0x4] sm:$0x1]
        %v336 = vld [vmem:[%s1 + $0x5] sm:$0x1]
        %v337 = vld [vmem:[%s1 + $0x6] sm:$0x1]
        %v338 = vld [vmem:[%s1 + $0x7] sm:$0x1]
        %v339 = vld [vmem:[%s1 + $0x8] sm:$0x1]
        %v340 = vld [vmem:[%s330] sm:$0xff]
        %v341 = vld [vmem:[%s330 + $0x10] sm:$0xff]
        %v342 = vld [vmem:[%s330 + $0x20] sm:$0xff]
        %v343 = vld [vmem:[%s330 + $0x30] sm:$0xff]
        %v344 = vld [vmem:[%s330 + $0x40] sm:$0xff]
        %v345 = vld [vmem:[%s330 + $0x50] sm:$0xff]
        %v346 = vld [vmem:[%s330 + $0x60] sm:$0xff]
        %v347 = vld [vmem:[%s330 + $0x70] sm:$0xff]
        %v349 = vperm.slane %v331, 0
        %v351 = vmul.f32 %v340, %v349
        %v352 = vmul.f32 %v341, %v349
        %v353 = vmul.f32 %v342, %v349
        %v354 = vmul.f32 %v343, %v349
        %v355 = vmul.f32 %v344, %v349
        %v356 = vmul.f32 %v345, %v349
        %v357 = vmul.f32 %v346, %v349
        %v358 = vmul.f32 %v347, %v349
        %v359 = vadd.f32 %v351, 0.0
        %v360 = vadd.f32 %v352, 0.0
        %v361 = vadd.f32 %v353, 0.0
        %v362 = vadd.f32 %v354, 0.0
        %v363 = vadd.f32 %v355, 0.0
        %v364 = vadd.f32 %v356, 0.0
        %v365 = vadd.f32 %v357, 0.0
        %v366 = vadd.f32 %v358, 0.0
        %s367 = scalar_lea.vmem %s330, 144
        %v368 = vld [vmem:[%s367] sm:$0xff]
        %v369 = vld [vmem:[%s367 + $0x10] sm:$0xff]
        %v370 = vld [vmem:[%s367 + $0x20] sm:$0xff]
        %v371 = vld [vmem:[%s367 + $0x30] sm:$0xff]
        %v372 = vld [vmem:[%s367 + $0x40] sm:$0xff]
        %v373 = vld [vmem:[%s367 + $0x50] sm:$0xff]
        %v374 = vld [vmem:[%s367 + $0x60] sm:$0xff]
        %v375 = vld [vmem:[%s367 + $0x70] sm:$0xff]
        %v377 = vperm.slane %v332, 0
        %v379 = vmul.f32 %v368, %v377
        %v380 = vmul.f32 %v369, %v377
        %v381 = vmul.f32 %v370, %v377
        %v382 = vmul.f32 %v371, %v377
        %v383 = vmul.f32 %v372, %v377
        %v384 = vmul.f32 %v373, %v377
        %v385 = vmul.f32 %v374, %v377
        %v386 = vmul.f32 %v375, %v377
        %v387 = vadd.f32 %v359, %v379
        %v388 = vadd.f32 %v360, %v380
        %v389 = vadd.f32 %v361, %v381
        %v390 = vadd.f32 %v362, %v382
        %v391 = vadd.f32 %v363, %v383
        %v392 = vadd.f32 %v364, %v384
        %v393 = vadd.f32 %v365, %v385
        %v394 = vadd.f32 %v366, %v386
        %v395 = vld [vmem:[%s330 + $0x1] sm:$0xff]
        %v396 = vld [vmem:[%s330 + $0x11] sm:$0xff]
        %v397 = vld [vmem:[%s330 + $0x21] sm:$0xff]
        %v398 = vld [vmem:[%s330 + $0x31] sm:$0xff]
        %v399 = vld [vmem:[%s330 + $0x41] sm:$0xff]
        %v400 = vld [vmem:[%s330 + $0x51] sm:$0xff]
        %v401 = vld [vmem:[%s330 + $0x61] sm:$0xff]
        %v402 = vld [vmem:[%s330 + $0x71] sm:$0xff]
        %v404 = vperm.slane %v333, 0
        %v406 = vmul.f32 %v395, %v404
        %v407 = vmul.f32 %v396, %v404
        %v408 = vmul.f32 %v397, %v404
        %v409 = vmul.f32 %v398, %v404
        %v410 = vmul.f32 %v399, %v404
        %v411 = vmul.f32 %v400, %v404
        %v412 = vmul.f32 %v401, %v404
        %v413 = vmul.f32 %v402, %v404
        %v414 = vadd.f32 %v387, %v406
        %v415 = vadd.f32 %v388, %v407
        %v416 = vadd.f32 %v389, %v408
        %v417 = vadd.f32 %v390, %v409
        %v418 = vadd.f32 %v391, %v410
        %v419 = vadd.f32 %v392, %v411
        %v420 = vadd.f32 %v393, %v412
        %v421 = vadd.f32 %v394, %v413
        %s422 = scalar_lea.vmem %s330, 288
        %v423 = vld [vmem:[%s422] sm:$0xff]
        %v424 = vld [vmem:[%s422 + $0x10] sm:$0xff]
        %v425 = vld [vmem:[%s422 + $0x20] sm:$0xff]
        %v426 = vld [vmem:[%s422 + $0x30] sm:$0xff]
        %v427 = vld [vmem:[%s422 + $0x40] sm:$0xff]
        %v428 = vld [vmem:[%s422 + $0x50] sm:$0xff]
        %v429 = vld [vmem:[%s422 + $0x60] sm:$0xff]
        %v430 = vld [vmem:[%s422 + $0x70] sm:$0xff]
        %v432 = vperm.slane %v334, 0
        %v434 = vmul.f32 %v423, %v432
        %v435 = vmul.f32 %v424, %v432
        %v436 = vmul.f32 %v425, %v432
        %v437 = vmul.f32 %v426, %v432
        %v438 = vmul.f32 %v427, %v432
        %v439 = vmul.f32 %v428, %v432
        %v440 = vmul.f32 %v429, %v432
        %v441 = vmul.f32 %v430, %v432
        %v442 = vadd.f32 %v414, %v434
        %v443 = vadd.f32 %v415, %v435
        %v444 = vadd.f32 %v416, %v436
        %v445 = vadd.f32 %v417, %v437
        %v446 = vadd.f32 %v418, %v438
        %v447 = vadd.f32 %v419, %v439
        %v448 = vadd.f32 %v420, %v440
        %v449 = vadd.f32 %v421, %v441
        %s450 = scalar_lea.vmem %s330, 432
        %v451 = vld [vmem:[%s450] sm:$0xff]
        %v452 = vld [vmem:[%s450 + $0x10] sm:$0xff]
        %v453 = vld [vmem:[%s450 + $0x20] sm:$0xff]
        %v454 = vld [vmem:[%s450 + $0x30] sm:$0xff]
        %v455 = vld [vmem:[%s450 + $0x40] sm:$0xff]
        %v456 = vld [vmem:[%s450 + $0x50] sm:$0xff]
        %v457 = vld [vmem:[%s450 + $0x60] sm:$0xff]
        %v458 = vld [vmem:[%s450 + $0x70] sm:$0xff]
        %v460 = vperm.slane %v335, 0
        %v462 = vmul.f32 %v451, %v460
        %v463 = vmul.f32 %v452, %v460
        %v464 = vmul.f32 %v453, %v460
        %v465 = vmul.f32 %v454, %v460
        %v466 = vmul.f32 %v455, %v460
        %v467 = vmul.f32 %v456, %v460
        %v468 = vmul.f32 %v457, %v460
        %v469 = vmul.f32 %v458, %v460
        %v470 = vadd.f32 %v442, %v462
        %v471 = vadd.f32 %v443, %v463
        %v472 = vadd.f32 %v444, %v464
        %v473 = vadd.f32 %v445, %v465
        %v474 = vadd.f32 %v446, %v466
        %v475 = vadd.f32 %v447, %v467
        %v476 = vadd.f32 %v448, %v468
        %v477 = vadd.f32 %v449, %v469
        %v478 = vld [vmem:[%s422 + $0x1] sm:$0xff]
        %v479 = vld [vmem:[%s422 + $0x11] sm:$0xff]
        %v480 = vld [vmem:[%s422 + $0x21] sm:$0xff]
        %v481 = vld [vmem:[%s422 + $0x31] sm:$0xff]
        %v482 = vld [vmem:[%s422 + $0x41] sm:$0xff]
        %v483 = vld [vmem:[%s422 + $0x51] sm:$0xff]
        %v484 = vld [vmem:[%s422 + $0x61] sm:$0xff]
        %v485 = vld [vmem:[%s422 + $0x71] sm:$0xff]
        %v487 = vperm.slane %v336, 0
        %v489 = vmul.f32 %v478, %v487
        %v490 = vmul.f32 %v479, %v487
        %v491 = vmul.f32 %v480, %v487
        %v492 = vmul.f32 %v481, %v487
        %v493 = vmul.f32 %v482, %v487
        %v494 = vmul.f32 %v483, %v487
        %v495 = vmul.f32 %v484, %v487
        %v496 = vmul.f32 %v485, %v487
        %v497 = vadd.f32 %v470, %v489
        %v498 = vadd.f32 %v471, %v490
        %v499 = vadd.f32 %v472, %v491
        %v500 = vadd.f32 %v473, %v492
        %v501 = vadd.f32 %v474, %v493
        %v502 = vadd.f32 %v475, %v494
        %v503 = vadd.f32 %v476, %v495
        %v504 = vadd.f32 %v477, %v496
        %s505 = scalar_lea.vmem %s330, 16
        %v506 = vld [vmem:[%s505] sm:$0xff]
        %v507 = vld [vmem:[%s505 + $0x10] sm:$0xff]
        %v508 = vld [vmem:[%s505 + $0x20] sm:$0xff]
        %v509 = vld [vmem:[%s505 + $0x30] sm:$0xff]
        %v510 = vld [vmem:[%s505 + $0x40] sm:$0xff]
        %v511 = vld [vmem:[%s505 + $0x50] sm:$0xff]
        %v512 = vld [vmem:[%s505 + $0x60] sm:$0xff]
        %v513 = vld [vmem:[%s505 + $0x70] sm:$0xff]
        %v515 = vperm.slane %v337, 0
        %v517 = vmul.f32 %v506, %v515
        %v518 = vmul.f32 %v507, %v515
        %v519 = vmul.f32 %v508, %v515
        %v520 = vmul.f32 %v509, %v515
        %v521 = vmul.f32 %v510, %v515
        %v522 = vmul.f32 %v511, %v515
        %v523 = vmul.f32 %v512, %v515
        %v524 = vmul.f32 %v513, %v515
        %v525 = vadd.f32 %v497, %v517
        %v526 = vadd.f32 %v498, %v518
        %v527 = vadd.f32 %v499, %v519
        %v528 = vadd.f32 %v500, %v520
        %v529 = vadd.f32 %v501, %v521
        %v530 = vadd.f32 %v502, %v522
        %v531 = vadd.f32 %v503, %v523
        %v532 = vadd.f32 %v504, %v524
        %s533 = scalar_lea.vmem %s330, 160
        %v534 = vld [vmem:[%s533] sm:$0xff]
        %v535 = vld [vmem:[%s533 + $0x10] sm:$0xff]
        %v536 = vld [vmem:[%s533 + $0x20] sm:$0xff]
        %v537 = vld [vmem:[%s533 + $0x30] sm:$0xff]
        %v538 = vld [vmem:[%s533 + $0x40] sm:$0xff]
        %v539 = vld [vmem:[%s533 + $0x50] sm:$0xff]
        %v540 = vld [vmem:[%s533 + $0x60] sm:$0xff]
        %v541 = vld [vmem:[%s533 + $0x70] sm:$0xff]
        %v543 = vperm.slane %v338, 0
        %v545 = vmul.f32 %v534, %v543
        %v546 = vmul.f32 %v535, %v543
        %v547 = vmul.f32 %v536, %v543
        %v548 = vmul.f32 %v537, %v543
        %v549 = vmul.f32 %v538, %v543
        %v550 = vmul.f32 %v539, %v543
        %v551 = vmul.f32 %v540, %v543
        %v552 = vmul.f32 %v541, %v543
        %v553 = vadd.f32 %v525, %v545
        %v554 = vadd.f32 %v526, %v546
        %v555 = vadd.f32 %v527, %v547
        %v556 = vadd.f32 %v528, %v548
        %v557 = vadd.f32 %v529, %v549
        %v558 = vadd.f32 %v530, %v550
        %v559 = vadd.f32 %v531, %v551
        %v560 = vadd.f32 %v532, %v552
        %v561 = vld [vmem:[%s505 + $0x1] sm:$0xff]
        %v562 = vld [vmem:[%s505 + $0x11] sm:$0xff]
        %v563 = vld [vmem:[%s505 + $0x21] sm:$0xff]
        %v564 = vld [vmem:[%s505 + $0x31] sm:$0xff]
        %v565 = vld [vmem:[%s505 + $0x41] sm:$0xff]
        %v566 = vld [vmem:[%s505 + $0x51] sm:$0xff]
        %v567 = vld [vmem:[%s505 + $0x61] sm:$0xff]
        %v568 = vld [vmem:[%s505 + $0x71] sm:$0xff]
        %v570 = vperm.slane %v339, 0
        %v572 = vmul.f32 %v561, %v570
        %v573 = vmul.f32 %v562, %v570
        %v574 = vmul.f32 %v563, %v570
        %v575 = vmul.f32 %v564, %v570
        %v576 = vmul.f32 %v565, %v570
        %v577 = vmul.f32 %v566, %v570
        %v578 = vmul.f32 %v567, %v570
        %v579 = vmul.f32 %v568, %v570
        %v580 = vadd.f32 %v553, %v572
        %v581 = vadd.f32 %v554, %v573
        %v582 = vadd.f32 %v555, %v574
        %v583 = vadd.f32 %v556, %v575
        %v584 = vadd.f32 %v557, %v576
        %v585 = vadd.f32 %v558, %v577
        %v586 = vadd.f32 %v559, %v578
        %v587 = vadd.f32 %v560, %v579
        %v588 = vld [vmem:[%s2] sm:$0x1]
        %v590 = vperm.slane %v588, 0
        %v592 = vadd.f32 %v580, %v590
        %v593 = vadd.f32 %v581, %v590
        %v594 = vadd.f32 %v582, %v590
        %v595 = vadd.f32 %v583, %v590
        %v596 = vadd.f32 %v584, %v590
        %v597 = vadd.f32 %v585, %v590
        %v598 = vadd.f32 %v586, %v590
        %v599 = vadd.f32 %v587, %v590
        %v600 = vld [vmem:[%s3] sm:$0xff]
        %v601 = vld [vmem:[%s4] sm:$0x1]
        %v603 = vperm.slane %v601, 0
        %vm605 = vcmask 64512
        %v607 = vsel %vm605, %v592, 0
        %v610 = vsel %vm605, %v593, 0
        %v613 = vsel %vm605, %v594, 0
        %v616 = vsel %vm605, %v595, 0
        %v619 = vsel %vm605, %v596, 0
        %v622 = vsel %vm605, %v597, 0
        %v625 = vsel %vm605, %v598, 0
        %v628 = vsel %vm605, %v599, 0
        %630 = vmatpush.msra.mxu0 0.0
        %631 = vmatpush.msra.mxu0 0.0
        %632 = vmatpush.msra.mxu0 0.0
        %633 = vmatpush.msra.mxu0 0.0
        %634 = vmatpush.msra.mxu0 0.0
        %635 = vmatpush.msra.mxu0 0.0
        %636 = vmatpush.msra.mxu0 0.0
        %637 = vmatpush.msra.mxu0 0.0
        %638 = vmatpush.msra.mxu0 0.0
        %639 = vmatpush.msra.mxu0 0.0
        %640 = vmatpush.msra.mxu0 0.0
        %641 = vmatpush.msra.mxu0 0.0
        %642 = vmatpush.msra.mxu0 0.0
        %643 = vmatpush.msra.mxu0 0.0
        %644 = vmatpush.msra.mxu0 0.0
        %645 = vmatpush.msra.mxu0 %v600
        %646 = vmatmul.f32.gmra.mxu0 %v607
        %v647 = vpop.f32.mrf.mxu0
        %v648 = vadd.f32 %v603, %v647
        %649 = vmatmul.f32.gmra.mxu0 %v610
        %v650 = vpop.f32.mrf.mxu0
        %v651 = vadd.f32 %v603, %v650
        %652 = vmatmul.f32.gmra.mxu0 %v613
        %v653 = vpop.f32.mrf.mxu0
        %v654 = vadd.f32 %v603, %v653
        %655 = vmatmul.f32.gmra.mxu0 %v616
        %v656 = vpop.f32.mrf.mxu0
        %v657 = vadd.f32 %v603, %v656
        %658 = vmatmul.f32.gmra.mxu0 %v619
        %v659 = vpop.f32.mrf.mxu0
        %v660 = vadd.f32 %v603, %v659
        %661 = vmatmul.f32.gmra.mxu0 %v622
        %v662 = vpop.f32.mrf.mxu0
        %v663 = vadd.f32 %v603, %v662
        %664 = vmatmul.f32.gmra.mxu0 %v625
        %v665 = vpop.f32.mrf.mxu0
        %v666 = vadd.f32 %v603, %v665
        %667 = vmatmul.f32.gmra.mxu0 %v628
        %v668 = vpop.f32.mrf.mxu0
        %v669 = vadd.f32 %v603, %v668
        %670 = vdwg.mxu0
        %v671 = vld [vmem:[%s5] sm:$0xff]
        %v672 = vld [vmem:[%s5 + $0x8] sm:$0xff]
        %v673 = vld [vmem:[%s6] sm:$0x1]
        %v675 = vperm.slane %v673, 0
        %vm677 = vcmask 130048
        %v679 = vsel %vm677, %v648, 0
        %v682 = vsel %vm677, %v651, 0
        %v685 = vsel %vm677, %v654, 0
        %v688 = vsel %vm677, %v657, 0
        %v691 = vsel %vm677, %v660, 0
        %v694 = vsel %vm677, %v663, 0
        %v697 = vsel %vm677, %v666, 0
        %v700 = vsel %vm677, %v669, 0
        %702 = vmatpush.msra.mxu0 0.0
        %703 = vmatpush.msra.mxu0 0.0
        %704 = vmatpush.msra.mxu0 0.0
        %705 = vmatpush.msra.mxu0 0.0
        %706 = vmatpush.msra.mxu0 0.0
        %707 = vmatpush.msra.mxu0 0.0
        %708 = vmatpush.msra.mxu0 0.0
        %709 = vmatpush.msra.mxu0 0.0
        %710 = vmatpush.msra.mxu0 0.0
        %711 = vmatpush.msra.mxu0 0.0
        %712 = vmatpush.msra.mxu0 0.0
        %713 = vmatpush.msra.mxu0 0.0
        %714 = vmatpush.msra.mxu0 0.0
        %715 = vmatpush.msra.mxu0 0.0
        %716 = vmatpush.msra.mxu0 %v672
        %717 = vmatpush.msra.mxu0 %v671
        %718 = vmatmul.f32.gmra.mxu0 %v679
        %v719 = vpop.f32.mrf.mxu0
        %v720 = vadd.f32 %v675, %v719
        %721 = vmatmul.f32.gmra.mxu0 %v682
        %v722 = vpop.f32.mrf.mxu0
        %v723 = vadd.f32 %v675, %v722
        %724 = vmatmul.f32.gmra.mxu0 %v685
        %v725 = vpop.f32.mrf.mxu0
        %v726 = vadd.f32 %v675, %v725
        %727 = vmatmul.f32.gmra.mxu0 %v688
        %v728 = vpop.f32.mrf.mxu0
        %v729 = vadd.f32 %v675, %v728
        %730 = vmatmul.f32.gmra.mxu0 %v691
        %v731 = vpop.f32.mrf.mxu0
        %v732 = vadd.f32 %v675, %v731
        %733 = vmatmul.f32.gmra.mxu0 %v694
        %v734 = vpop.f32.mrf.mxu0
        %v735 = vadd.f32 %v675, %v734
        %736 = vmatmul.f32.gmra.mxu0 %v697
        %v737 = vpop.f32.mrf.mxu0
        %v738 = vadd.f32 %v675, %v737
        %739 = vmatmul.f32.gmra.mxu0 %v700
        %v740 = vpop.f32.mrf.mxu0
        %v741 = vadd.f32 %v675, %v740
        %742 = vdwg.mxu0
        %v743 = vmul.f32 %v720, 0.5
        %v744 = vmul.f32 %v723, 0.5
        %v745 = vmul.f32 %v726, 0.5
        %v746 = vmul.f32 %v729, 0.5
        %v747 = vmul.f32 %v732, 0.5
        %v748 = vmul.f32 %v735, 0.5
        %v749 = vmul.f32 %v738, 0.5
        %v750 = vmul.f32 %v741, 0.5
        %v751 = vmul.f32 %v720, 0.70710677
        %v752 = vmul.f32 %v723, 0.70710677
        %v753 = vmul.f32 %v726, 0.70710677
        %v754 = vmul.f32 %v729, 0.70710677
        %v755 = vmul.f32 %v732, 0.70710677
        %v756 = vmul.f32 %v735, 0.70710677
        %v757 = vmul.f32 %v738, 0.70710677
        %v758 = vmul.f32 %v741, 0.70710677
        %vm759 = vcmp.ge.f32.partialorder %v751, 0.0
        %vm760 = vcmp.ge.f32.partialorder %v752, 0.0
        %vm761 = vcmp.ge.f32.partialorder %v753, 0.0
        %vm762 = vcmp.ge.f32.partialorder %v754, 0.0
        %vm763 = vcmp.ge.f32.partialorder %v755, 0.0
        %vm764 = vcmp.ge.f32.partialorder %v756, 0.0
        %vm765 = vcmp.ge.f32.partialorder %v757, 0.0
        %vm766 = vcmp.ge.f32.partialorder %v758, 0.0
        %v767 = vsel %vm759, 1.0, -1.0
        %v768 = vsel %vm760, 1.0, -1.0
        %v769 = vsel %vm761, 1.0, -1.0
        %v770 = vsel %vm762, 1.0, -1.0
        %v771 = vsel %vm763, 1.0, -1.0
        %v772 = vsel %vm764, 1.0, -1.0
        %v773 = vsel %vm765, 1.0, -1.0
        %v774 = vsel %vm766, 1.0, -1.0
        %v775 = vand.u32 2147483647, %v751
        %v776 = vand.u32 2147483647, %v752
        %v777 = vand.u32 2147483647, %v753
        %v778 = vand.u32 2147483647, %v754
        %v779 = vand.u32 2147483647, %v755
        %v780 = vand.u32 2147483647, %v756
        %v781 = vand.u32 2147483647, %v757
        %v782 = vand.u32 2147483647, %v758
        %v783 = vmul.f32 %v775, 0.3275911
        %v784 = vmul.f32 %v776, 0.3275911
        %v785 = vmul.f32 %v777, 0.3275911
        %v786 = vmul.f32 %v778, 0.3275911
        %v787 = vmul.f32 %v779, 0.3275911
        %v788 = vmul.f32 %v780, 0.3275911
        %v789 = vmul.f32 %v781, 0.3275911
        %v790 = vmul.f32 %v782, 0.3275911
        %v791 = vadd.f32 %v783, 1.0
        %v792 = vadd.f32 %v784, 1.0
        %v793 = vadd.f32 %v785, 1.0
        %v794 = vadd.f32 %v786, 1.0
        %v795 = vadd.f32 %v787, 1.0
        %v796 = vadd.f32 %v788, 1.0
        %v797 = vadd.f32 %v789, 1.0
        %v798 = vadd.f32 %v790, 1.0
        %v799 = vrcp.pop %v791
        %v800 = vmul.f32 %v791, %v799
        %v801 = vsub.f32 1.0, %v800
        %v802 = vmul.f32 %v799, %v801
        %v803 = vadd.f32 %v799, %v802
        %vm804 = vweird.f32 %v791
        %vm805 = vweird.f32 %v799
        %vm806 = vmor %vm804, %vm805
        %v807 = vsel %vm806, %v799, %v803
        %v808 = vand.u32 2147483647, %v791
        %vm809 = vcmp.eq.f32.partialorder %v808, 8.507059e+37
        %v810 = vand.u32 %v791, 2147483648
        %v811 = vor.u32 1.1754944e-38, %v810
        %v812 = vsel %vm809, %v811, %v807
        %v813 = vmul.f32 1.0, %v812
        %v814 = vrcp.pop %v792
        %v815 = vmul.f32 %v792, %v814
        %v816 = vsub.f32 1.0, %v815
        %v817 = vmul.f32 %v814, %v816
        %v818 = vadd.f32 %v814, %v817
        %vm819 = vweird.f32 %v792
        %vm820 = vweird.f32 %v814
        %vm821 = vmor %vm819, %vm820
        %v822 = vsel %vm821, %v814, %v818
        %v823 = vand.u32 2147483647, %v792
        %vm824 = vcmp.eq.f32.partialorder %v823, 8.507059e+37
        %v825 = vand.u32 %v792, 2147483648
        %v826 = vor.u32 1.1754944e-38, %v825
        %v827 = vsel %vm824, %v826, %v822
        %v828 = vmul.f32 1.0, %v827
        %v829 = vrcp.pop %v793
        %v830 = vmul.f32 %v793, %v829
        %v831 = vsub.f32 1.0, %v830
        %v832 = vmul.f32 %v829, %v831
        %v833 = vadd.f32 %v829, %v832
        %vm834 = vweird.f32 %v793
        %vm835 = vweird.f32 %v829
        %vm836 = vmor %vm834, %vm835
        %v837 = vsel %vm836, %v829, %v833
        %v838 = vand.u32 2147483647, %v793
        %vm839 = vcmp.eq.f32.partialorder %v838, 8.507059e+37
        %v840 = vand.u32 %v793, 2147483648
        %v841 = vor.u32 1.1754944e-38, %v840
        %v842 = vsel %vm839, %v841, %v837
        %v843 = vmul.f32 1.0, %v842
        %v844 = vrcp.pop %v794
        %v845 = vmul.f32 %v794, %v844
        %v846 = vsub.f32 1.0, %v845
        %v847 = vmul.f32 %v844, %v846
        %v848 = vadd.f32 %v844, %v847
        %vm849 = vweird.f32 %v794
        %vm850 = vweird.f32 %v844
        %vm851 = vmor %vm849, %vm850
        %v852 = vsel %vm851, %v844, %v848
        %v853 = vand.u32 2147483647, %v794
        %vm854 = vcmp.eq.f32.partialorder %v853, 8.507059e+37
        %v855 = vand.u32 %v794, 2147483648
        %v856 = vor.u32 1.1754944e-38, %v855
        %v857 = vsel %vm854, %v856, %v852
        %v858 = vmul.f32 1.0, %v857
        %v859 = vrcp.pop %v795
        %v860 = vmul.f32 %v795, %v859
        %v861 = vsub.f32 1.0, %v860
        %v862 = vmul.f32 %v859, %v861
        %v863 = vadd.f32 %v859, %v862
        %vm864 = vweird.f32 %v795
        %vm865 = vweird.f32 %v859
        %vm866 = vmor %vm864, %vm865
        %v867 = vsel %vm866, %v859, %v863
        %v868 = vand.u32 2147483647, %v795
        %vm869 = vcmp.eq.f32.partialorder %v868, 8.507059e+37
        %v870 = vand.u32 %v795, 2147483648
        %v871 = vor.u32 1.1754944e-38, %v870
        %v872 = vsel %vm869, %v871, %v867
        %v873 = vmul.f32 1.0, %v872
        %v874 = vrcp.pop %v796
        %v875 = vmul.f32 %v796, %v874
        %v876 = vsub.f32 1.0, %v875
        %v877 = vmul.f32 %v874, %v876
        %v878 = vadd.f32 %v874, %v877
        %vm879 = vweird.f32 %v796
        %vm880 = vweird.f32 %v874
        %vm881 = vmor %vm879, %vm880
        %v882 = vsel %vm881, %v874, %v878
        %v883 = vand.u32 2147483647, %v796
        %vm884 = vcmp.eq.f32.partialorder %v883, 8.507059e+37
        %v885 = vand.u32 %v796, 2147483648
        %v886 = vor.u32 1.1754944e-38, %v885
        %v887 = vsel %vm884, %v886, %v882
        %v888 = vmul.f32 1.0, %v887
        %v889 = vrcp.pop %v797
        %v890 = vmul.f32 %v797, %v889
        %v891 = vsub.f32 1.0, %v890
        %v892 = vmul.f32 %v889, %v891
        %v893 = vadd.f32 %v889, %v892
        %vm894 = vweird.f32 %v797
        %vm895 = vweird.f32 %v889
        %vm896 = vmor %vm894, %vm895
        %v897 = vsel %vm896, %v889, %v893
        %v898 = vand.u32 2147483647, %v797
        %vm899 = vcmp.eq.f32.partialorder %v898, 8.507059e+37
        %v900 = vand.u32 %v797, 2147483648
        %v901 = vor.u32 1.1754944e-38, %v900
        %v902 = vsel %vm899, %v901, %v897
        %v903 = vmul.f32 1.0, %v902
        %v904 = vrcp.pop %v798
        %v905 = vmul.f32 %v798, %v904
        %v906 = vsub.f32 1.0, %v905
        %v907 = vmul.f32 %v904, %v906
        %v908 = vadd.f32 %v904, %v907
        %vm909 = vweird.f32 %v798
        %vm910 = vweird.f32 %v904
        %vm911 = vmor %vm909, %vm910
        %v912 = vsel %vm911, %v904, %v908
        %v913 = vand.u32 2147483647, %v798
        %vm914 = vcmp.eq.f32.partialorder %v913, 8.507059e+37
        %v915 = vand.u32 %v798, 2147483648
        %v916 = vor.u32 1.1754944e-38, %v915
        %v917 = vsel %vm914, %v916, %v912
        %v918 = vmul.f32 1.0, %v917
        %v919 = vmul.f32 %v813, 1.0614054
        %v920 = vmul.f32 %v828, 1.0614054
        %v921 = vmul.f32 %v843, 1.0614054
        %v922 = vmul.f32 %v858, 1.0614054
        %v923 = vmul.f32 %v873, 1.0614054
        %v924 = vmul.f32 %v888, 1.0614054
        %v925 = vmul.f32 %v903, 1.0614054
        %v926 = vmul.f32 %v918, 1.0614054
        %v927 = vadd.f32 %v919, -1.4531521
        %v928 = vadd.f32 %v920, -1.4531521
        %v929 = vadd.f32 %v921, -1.4531521
        %v930 = vadd.f32 %v922, -1.4531521
        %v931 = vadd.f32 %v923, -1.4531521
        %v932 = vadd.f32 %v924, -1.4531521
        %v933 = vadd.f32 %v925, -1.4531521
        %v934 = vadd.f32 %v926, -1.4531521
        %v935 = vmul.f32 %v813, %v927
        %v936 = vmul.f32 %v828, %v928
        %v937 = vmul.f32 %v843, %v929
        %v938 = vmul.f32 %v858, %v930
        %v939 = vmul.f32 %v873, %v931
        %v940 = vmul.f32 %v888, %v932
        %v941 = vmul.f32 %v903, %v933
        %v942 = vmul.f32 %v918, %v934
        %v943 = vadd.f32 %v935, 1.4214138
        %v944 = vadd.f32 %v936, 1.4214138
        %v945 = vadd.f32 %v937, 1.4214138
        %v946 = vadd.f32 %v938, 1.4214138
        %v947 = vadd.f32 %v939, 1.4214138
        %v948 = vadd.f32 %v940, 1.4214138
        %v949 = vadd.f32 %v941, 1.4214138
        %v950 = vadd.f32 %v942, 1.4214138
        %v951 = vmul.f32 %v813, %v943
        %v952 = vmul.f32 %v828, %v944
        %v953 = vmul.f32 %v843, %v945
        %v954 = vmul.f32 %v858, %v946
        %v955 = vmul.f32 %v873, %v947
        %v956 = vmul.f32 %v888, %v948
        %v957 = vmul.f32 %v903, %v949
        %v958 = vmul.f32 %v918, %v950
        %v959 = vadd.f32 %v951, -0.28449672
        %v960 = vadd.f32 %v952, -0.28449672
        %v961 = vadd.f32 %v953, -0.28449672
        %v962 = vadd.f32 %v954, -0.28449672
        %v963 = vadd.f32 %v955, -0.28449672
        %v964 = vadd.f32 %v956, -0.28449672
        %v965 = vadd.f32 %v957, -0.28449672
        %v966 = vadd.f32 %v958, -0.28449672
        %v967 = vmul.f32 %v813, %v959
        %v968 = vmul.f32 %v828, %v960
        %v969 = vmul.f32 %v843, %v961
        %v970 = vmul.f32 %v858, %v962
        %v971 = vmul.f32 %v873, %v963
        %v972 = vmul.f32 %v888, %v964
        %v973 = vmul.f32 %v903, %v965
        %v974 = vmul.f32 %v918, %v966
        %v975 = vadd.f32 %v967, 0.2548296
        %v976 = vadd.f32 %v968, 0.2548296
        %v977 = vadd.f32 %v969, 0.2548296
        %v978 = vadd.f32 %v970, 0.2548296
        %v979 = vadd.f32 %v971, 0.2548296
        %v980 = vadd.f32 %v972, 0.2548296
        %v981 = vadd.f32 %v973, 0.2548296
        %v982 = vadd.f32 %v974, 0.2548296
        %v983 = vmul.f32 %v813, %v975
        %v984 = vmul.f32 %v828, %v976
        %v985 = vmul.f32 %v843, %v977
        %v986 = vmul.f32 %v858, %v978
        %v987 = vmul.f32 %v873, %v979
        %v988 = vmul.f32 %v888, %v980
        %v989 = vmul.f32 %v903, %v981
        %v990 = vmul.f32 %v918, %v982
        %v991 = vsub.f32 0.0, %v775
        %v992 = vsub.f32 0.0, %v776
        %v993 = vsub.f32 0.0, %v777
        %v994 = vsub.f32 0.0, %v778
        %v995 = vsub.f32 0.0, %v779
        %v996 = vsub.f32 0.0, %v780
        %v997 = vsub.f32 0.0, %v781
        %v998 = vsub.f32 0.0, %v782
        %v999 = vmul.f32 %v991, %v775
        %v1000 = vmul.f32 %v992, %v776
        %v1001 = vmul.f32 %v993, %v777
        %v1002 = vmul.f32 %v994, %v778
        %v1003 = vmul.f32 %v995, %v779
        %v1004 = vmul.f32 %v996, %v780
        %v1005 = vmul.f32 %v997, %v781
        %v1006 = vmul.f32 %v998, %v782
        %v1007 = vmul.f32 %v999, 1.442695
        %v1008 = vpow.pop %v1007
        %v1009 = vmul.f32 %v1000, 1.442695
        %v1010 = vpow.pop %v1009
        %v1011 = vmul.f32 %v1001, 1.442695
        %v1012 = vpow.pop %v1011
        %v1013 = vmul.f32 %v1002, 1.442695
        %v1014 = vpow.pop %v1013
        %v1015 = vmul.f32 %v1003, 1.442695
        %v1016 = vpow.pop %v1015
        %v1017 = vmul.f32 %v1004, 1.442695
        %v1018 = vpow.pop %v1017
        %v1019 = vmul.f32 %v1005, 1.442695
        %v1020 = vpow.pop %v1019
        %v1021 = vmul.f32 %v1006, 1.442695
        %v1022 = vpow.pop %v1021
        %v1023 = vmul.f32 %v983, %v1008
        %v1024 = vmul.f32 %v984, %v1010
        %v1025 = vmul.f32 %v985, %v1012
        %v1026 = vmul.f32 %v986, %v1014
        %v1027 = vmul.f32 %v987, %v1016
        %v1028 = vmul.f32 %v988, %v1018
        %v1029 = vmul.f32 %v989, %v1020
        %v1030 = vmul.f32 %v990, %v1022
        %v1031 = vsub.f32 1.0, %v1023
        %v1032 = vsub.f32 1.0, %v1024
        %v1033 = vsub.f32 1.0, %v1025
        %v1034 = vsub.f32 1.0, %v1026
        %v1035 = vsub.f32 1.0, %v1027
        %v1036 = vsub.f32 1.0, %v1028
        %v1037 = vsub.f32 1.0, %v1029
        %v1038 = vsub.f32 1.0, %v1030
        %v1039 = vmul.f32 %v767, %v1031
        %v1040 = vmul.f32 %v768, %v1032
        %v1041 = vmul.f32 %v769, %v1033
        %v1042 = vmul.f32 %v770, %v1034
        %v1043 = vmul.f32 %v771, %v1035
        %v1044 = vmul.f32 %v772, %v1036
        %v1045 = vmul.f32 %v773, %v1037
        %v1046 = vmul.f32 %v774, %v1038
        %v1047 = vadd.f32 %v1039, 1.0
        %v1048 = vadd.f32 %v1040, 1.0
        %v1049 = vadd.f32 %v1041, 1.0
        %v1050 = vadd.f32 %v1042, 1.0
        %v1051 = vadd.f32 %v1043, 1.0
        %v1052 = vadd.f32 %v1044, 1.0
        %v1053 = vadd.f32 %v1045, 1.0
        %v1054 = vadd.f32 %v1046, 1.0
        %v1055 = vmul.f32 %v743, %v1047
        %v1056 = vmul.f32 %v744, %v1048
        %v1057 = vmul.f32 %v745, %v1049
        %v1058 = vmul.f32 %v746, %v1050
        %v1059 = vmul.f32 %v747, %v1051
        %v1060 = vmul.f32 %v748, %v1052
        %v1061 = vmul.f32 %v749, %v1053
        %v1062 = vmul.f32 %v750, %v1054
        %v1063 = vld [vmem:[%s7] sm:$0xff]
        %v1064 = vld [vmem:[%s7 + $0x8] sm:$0xff]
        %v1065 = vld [vmem:[%s7 + $0x10] sm:$0xff]
        %v1066 = vld [vmem:[%s7 + $0x18] sm:$0xff]
        %vm1067 = vcmask 261120
        %v1069 = vsel %vm1067, %v1055, 0
        %v1072 = vsel %vm1067, %v1056, 0
        %v1075 = vsel %vm1067, %v1057, 0
        %v1078 = vsel %vm1067, %v1058, 0
        %v1081 = vsel %vm1067, %v1059, 0
        %v1084 = vsel %vm1067, %v1060, 0
        %v1087 = vsel %vm1067, %v1061, 0
        %v1090 = vsel %vm1067, %v1062, 0
        %1092 = vmatpush.msra.mxu0 0.0
        %1093 = vmatpush.msra.mxu0 0.0
        %1094 = vmatpush.msra.mxu0 0.0
        %1095 = vmatpush.msra.mxu0 0.0
        %1096 = vmatpush.msra.mxu0 0.0
        %1097 = vmatpush.msra.mxu0 0.0
        %1098 = vmatpush.msra.mxu0 0.0
        %1099 = vmatpush.msra.mxu0 0.0
        %1100 = vmatpush.msra.mxu0 0.0
        %1101 = vmatpush.msra.mxu0 0.0
        %1102 = vmatpush.msra.mxu0 0.0
        %1103 = vmatpush.msra.mxu0 0.0
        %1104 = vmatpush.msra.mxu0 %v1066
        %1105 = vmatpush.msra.mxu0 %v1065
        %1106 = vmatpush.msra.mxu0 %v1064
        %1107 = vmatpush.msra.mxu0 %v1063
        %1108 = vmatmul.f32.gmra.mxu0 %v1069
        %v1109 = vpop.f32.mrf.mxu0
        %v1110 = vadd.f32 0.0, %v1109
        %1111 = vmatmul.f32.gmra.mxu0 %v1072
        %v1112 = vpop.f32.mrf.mxu0
        %v1113 = vadd.f32 0.0, %v1112
        %1114 = vmatmul.f32.gmra.mxu0 %v1075
        %v1115 = vpop.f32.mrf.mxu0
        %v1116 = vadd.f32 0.0, %v1115
        %1117 = vmatmul.f32.gmra.mxu0 %v1078
        %v1118 = vpop.f32.mrf.mxu0
        %v1119 = vadd.f32 0.0, %v1118
        %1120 = vmatmul.f32.gmra.mxu0 %v1081
        %v1121 = vpop.f32.mrf.mxu0
        %v1122 = vadd.f32 0.0, %v1121
        %1123 = vmatmul.f32.gmra.mxu0 %v1084
        %v1124 = vpop.f32.mrf.mxu0
        %v1125 = vadd.f32 0.0, %v1124
        %1126 = vmatmul.f32.gmra.mxu0 %v1087
        %v1127 = vpop.f32.mrf.mxu0
        %v1128 = vadd.f32 0.0, %v1127
        %1129 = vmatmul.f32.gmra.mxu0 %v1090
        %v1130 = vpop.f32.mrf.mxu0
        %v1131 = vadd.f32 0.0, %v1130
        %1132 = vdwg.mxu0
        %v1133 = vadd.f32 %v648, %v1110
        %v1134 = vadd.f32 %v651, %v1113
        %v1135 = vadd.f32 %v654, %v1116
        %v1136 = vadd.f32 %v657, %v1119
        %v1137 = vadd.f32 %v660, %v1122
        %v1138 = vadd.f32 %v663, %v1125
        %v1139 = vadd.f32 %v666, %v1128
        %v1140 = vadd.f32 %v669, %v1131
        %v1141 = vld [vmem:[%s8] sm:$0x1]
        %v1143 = vperm.slane %v1141, 0
        %v1145 = vadd.f32 %v1133, %v1143
        %v1146 = vadd.f32 %v1134, %v1143
        %v1147 = vadd.f32 %v1135, %v1143
        %v1148 = vadd.f32 %v1136, %v1143
        %v1149 = vadd.f32 %v1137, %v1143
        %v1150 = vadd.f32 %v1138, %v1143
        %v1151 = vadd.f32 %v1139, %v1143
        %v1152 = vadd.f32 %v1140, %v1143
        %1153 = vxpose.xlu0.b32.start [1/16] %v1145, 128
        %1154 = vxpose.xlu0.b32.cont [2/16] %v1146, 128
        %1155 = vxpose.xlu0.b32.cont [3/16] %v1147, 128
        %1156 = vxpose.xlu0.b32.cont [4/16] %v1148, 128
        %1157 = vxpose.xlu0.b32.cont [5/16] %v1149, 128
        %1158 = vxpose.xlu0.b32.cont [6/16] %v1150, 128
        %1159 = vxpose.xlu0.b32.cont [7/16] %v1151, 128
        %1160 = vxpose.xlu0.b32.cont [8/16] %v1152, 128
        %1161 = vxpose.xlu0.b32.cont [9/16] 0.0, 128
        %1162 = vxpose.xlu0.b32.cont [10/16] 0.0, 128
        %1163 = vxpose.xlu0.b32.cont [11/16] 0.0, 128
        %1164 = vxpose.xlu0.b32.cont [12/16] 0.0, 128
        %1165 = vxpose.xlu0.b32.cont [13/16] 0.0, 128
        %1166 = vxpose.xlu0.b32.cont [14/16] 0.0, 128
        %1167 = vxpose.xlu0.b32.cont [15/16] 0.0, 128
        %1168 = vxpose.xlu0.b32.end [16/16] 0.0, 128
        %v1169 = vpop.trf.xlu0
        %v1170 = vpop.trf.xlu0
        %v1171 = vpop.trf.xlu0
        %v1172 = vpop.trf.xlu0
        %v1173 = vpop.trf.xlu0
        %v1174 = vpop.trf.xlu0
        %v1175 = vpop.trf.xlu0
        %v1176 = vpop.trf.xlu0
        %v1177 = vpop.trf.xlu0
        %v1178 = vpop.trf.xlu0
        %v1179 = vpop.trf.xlu0
        %v1180 = vpop.trf.xlu0
        %v1181 = vpop.trf.xlu0
        %v1182 = vpop.trf.xlu0
        %v1183 = vpop.trf.xlu0
        %v1184 = vpop.trf.xlu0
        %vm1185 = vcmask 523264
        %1186 = vst.msk [vmem:[%s325] sm:$0xff] %vm1185, %v1169
        %1187 = vst.msk [vmem:[%s325 + $0x8] sm:$0xff] %vm1185, %v1170
        %s1188 = sand.u32 %s225, 1
        %s1189 = scalar_lea.sflag [#allocation3], %s1188
        %s1190 = sand.u32 %s225, 1
        %s1191 = smul.addr %s1190, 16
        %s1192 = scalar_lea.vmem [#allocation2], %s1191
        // Predicated region
        $region57: #{tpu_custom_call.1} parent=55 // pred_check
          %p1193 = pneg %p235
        $region58: #{tpu_custom_call.1} parent=55 // pred_check_branch
          %1195 = sbr.rel (%p1193) target = $region60
        $region59: #{tpu_custom_call.1} parent=55 // pred_region
          %1197 = vsyncadd %s1189, 0
          %s1198 = smul.addr %s23, 2
          %s1199 = smul.addr %s1198, 8
          %s1200 = scalar_lea.hbm %s9, %s1199
          %s1201 = sshll.u32 %s1192, 4
          %s1202 = int_to_ptr.vmem [resolvable:$true] %s1201
          %s1203 = sshll.u32 %s1200, 4
          %s1204 = int_to_ptr.hbm [resolvable:$true] %s1203
          %1209 = dma.vmem_to_hbm [thread:$0]  %s1202, 256, %s1204, %s1189, 128, 128, 8
        $region60: #{tpu_custom_call.1} parent=55 // pred_fallthru
          _
      $region56: #{tpu_custom_call.1} parent=5 // pred_fallthru
        _
      %p1210 = scmp.le.s32.totalorder 2, %s18
      // Predicated region
      $region61: #{tpu_custom_call.1} parent=5 // pred_check
        %p1211 = pneg %p1210
      $region62: #{tpu_custom_call.1} parent=5 // pred_check_branch
        %1213 = sbr.rel (%p1211) target = $region64
      $region63: #{tpu_custom_call.1} parent=5 // pred_region
        %s1214 = ssub.s32 %s18, 2
        // Predicated region
        $region65: #{tpu_custom_call.1} parent=63 // pred_check
          %p1215 = pneg %p241
        $region66: #{tpu_custom_call.1} parent=63 // pred_check_branch
          %1217 = sbr.rel (%p1215) target = $region68
        $region67: #{tpu_custom_call.1} parent=63 // pred_region
          %s1218 = sand.u32 %s226, 1
          %s1219 = scalar_lea.sflag [#allocation3], %s1218
          %s1220 = sand.u32 %s226, 1
          %s1221 = smul.addr %s1220, 16
          %s1222 = scalar_lea.vmem [#allocation2], %s1221
          %1224 = dma.done %s1219, 256
        $region68: #{tpu_custom_call.1} parent=63 // pred_fallthru
          _
      $region64: #{tpu_custom_call.1} parent=5 // pred_fallthru
        _
    $region6: #{tpu_custom_call.1} parent=1 // loop_footer
      %s22 = sadd.s32 1, %s18
    $region7: #{tpu_custom_call.1} parent=1 // loop_footer_branch
      %17 = sbr.rel target = $region3
    $region8: #{tpu_custom_call.1} parent=1 // loop_exit
      _
    %1225 = vsyncpa [#allocation3], 1
    %s1226 = scalar_lea.sflag [#allocation3], 1
    %1227 = vsyncpa %s1226, 1

</llo_original>
